<compile_context>
chip_gen: v7x
topology: tpu7x:2x2x1
jax: 0.10.0
libtpu: 0.0.40
codegen_flags: <defaults>
</compile_context>

<pallas_src>
import functools

import jax
import jax.numpy as jnp
import numpy as np
from jax.experimental import pallas as pl
from jax.experimental.pallas import tpu as pltpu  # noqa: F401  (TPU backend)

BN_EPS = 1e-5
LANE = 128


def _round_up(n, m):
    return ((n + m - 1) // m) * m


def _full_spec(shape):
    # one grid point, full-array block
    return pl.BlockSpec(shape, lambda i: (0,) * len(shape))


# ----------------------------- fused kernel ----------------------------------
def _bn_relu(x, gamma, beta, inv_n):
    # nn.BatchNorm1d training mode (biased batch variance) + ReLU, single pass.
    s = jnp.sum(x, axis=0, keepdims=True)
    ss = jnp.sum(x * x, axis=0, keepdims=True)
    mu = s * inv_n
    var = ss * inv_n - mu * mu
    scale = gamma * jax.lax.rsqrt(var + BN_EPS)
    return jnp.maximum((x - mu) * scale + beta, 0.0)


def fused_graphcnn_kernel(adj_ref, x_ref, w_ref, p_ref, gp_ref,
                          pooled_ref, nodes_ref):
    n_nodes = adj_ref.shape[0]
    inv_n = 1.0 / float(n_nodes)
    num_gcn_layers = w_ref.shape[0]

    adj = adj_ref[...]
    h = x_ref[...]

    # Static (unrolled) loop over GCN layers; h lives in vregs/VMEM throughout.
    for l in range(num_gcn_layers):
        w1t = w_ref[l, 0, :, :]
        w2t = w_ref[l, 1, :, :]
        b1 = p_ref[l, 0:1, :]
        g1 = p_ref[l, 1:2, :]
        be1 = p_ref[l, 2:3, :]
        b2 = p_ref[l, 3:4, :]
        go = p_ref[l, 4:5, :]
        beo = p_ref[l, 5:6, :]

        # neighbor sum pooling: adj @ h  (MXU)
        pooled = jnp.dot(adj, h, preferred_element_type=jnp.float32)
        # MLP hidden layer: Linear -> BatchNorm1d -> ReLU
        z1 = jnp.dot(pooled, w1t, preferred_element_type=jnp.float32) + b1
        a1 = _bn_relu(z1, g1, be1, inv_n)
        # MLP output layer: Linear (no activation inside the MLP)
        z2 = jnp.dot(a1, w2t, preferred_element_type=jnp.float32) + b2
        # outer BatchNorm1d + ReLU (GraphCNN.next_layer)
        h = _bn_relu(z2, go, beo, inv_n)

    nodes_ref[...] = h
    pooled_ref[...] = jnp.dot(gp_ref[...], h, preferred_element_type=jnp.float32)


# ----------------------------- wrapper ----------------------------------------
def pack_params(params, d_pad):
    """Pack per-layer weights/vectors into two dense, lane-padded arrays."""
    w_mats, p_mats = [], []
    for (w1t, b1, g1, be1, w2t, b2, go, beo) in params:
        w1p = jnp.zeros((d_pad, d_pad), jnp.float32)
        w1p = w1p.at[:w1t.shape[0], :w1t.shape[1]].set(w1t)
        w2p = jnp.zeros((d_pad, d_pad), jnp.float32)
        w2p = w2p.at[:w2t.shape[0], :w2t.shape[1]].set(w2t)
        w_mats.append(jnp.stack([w1p, w2p]))           # [2, Dp, Dp]

        rows = []
        for v in (b1, g1, be1, b2, go, beo):
            v = v.reshape(-1)
            rows.append(jnp.zeros((d_pad,), jnp.float32).at[:v.shape[0]].set(v))
        p_block = jnp.stack(rows)                       # [6, Dp]
        p_block = jnp.concatenate(
            [p_block, jnp.zeros((2, d_pad), jnp.float32)], axis=0)  # -> [8, Dp]
        p_mats.append(p_block)
    return jnp.stack(w_mats), jnp.stack(p_mats)         # [L,2,Dp,Dp], [L,8,Dp]


@functools.partial(jax.jit, static_argnames=("hidden_dim",))
def graph_cnn_forward(x, graph_pool, adj, w_all, p_all, hidden_dim):
    N, in_dim = x.shape
    G = graph_pool.shape[0]
    d_pad = w_all.shape[-1]

    # lane-pad the input features (zero columns contribute nothing)
    x_p = jnp.zeros((N, d_pad), jnp.float32).at[:, :in_dim].set(x)

    pooled_p, nodes_p = pl.pallas_call(
        fused_graphcnn_kernel,
        out_shape=(jax.ShapeDtypeStruct((G, d_pad), jnp.float32),
                   jax.ShapeDtypeStruct((N, d_pad), jnp.float32)),
        grid=(1,),
        in_specs=[_full_spec(adj.shape), _full_spec(x_p.shape),
                  _full_spec(w_all.shape), _full_spec(p_all.shape),
                  _full_spec(graph_pool.shape)],
        out_specs=(_full_spec((G, d_pad)), _full_spec((N, d_pad))),
    )(adj, x_p, w_all, p_all, graph_pool)

    return pooled_p[:, :hidden_dim], nodes_p[:, :hidden_dim]


# ----------------------------- reference (pure JAX) ---------------------------
def _batchnorm_train_ref(x, gamma, beta):
    mu = jnp.mean(x, axis=0, keepdims=True)
    var = jnp.mean((x - mu) * (x - mu), axis=0, keepdims=True)
    return (x - mu) * jax.lax.rsqrt(var + BN_EPS) * gamma + beta


def graph_cnn_reference(x, graph_pool, adj, params):
    h = x
    for (w1t, b1, g1, be1, w2t, b2, go, beo) in params:
        pooled = adj @ h
        z1 = pooled @ w1t + b1
        a1 = jnp.maximum(_batchnorm_train_ref(z1, g1, be1), 0.0)
        z2 = a1 @ w2t + b2
        h = jnp.maximum(_batchnorm_train_ref(z2, go, beo), 0.0)
    return graph_pool @ h, h


# ----------------------------- parameter setup --------------------------------
def init_params(key, num_layers, num_mlp_layers, input_dim, hidden_dim):
    assert num_mlp_layers == 2, "kernel is specialized to num_mlp_layers=2"
    params = []
    for layer in range(num_layers - 1):
        in_dim = input_dim if layer == 0 else hidden_dim
        key, k1, k2, k3, k4, k5, k6, k7, k8 = jax.random.split(key, 9)
        # Linear weights stored pre-transposed [in, out]
        w1t = jax.random.normal(k1, (in_dim, hidden_dim), jnp.float32) * 0.1
        b1 = jax.random.normal(k2, (1, hidden_dim), jnp.float32) * 0.1
        w2t = jax.random.normal(k3, (hidden_dim, hidden_dim), jnp.float32) * 0.1
        b2 = jax.random.normal(k4, (1, hidden_dim), jnp.float32) * 0.1
        # BatchNorm affine params (MLP-internal BN and GraphCNN outer BN)
        g1 = 1.0 + 0.05 * jax.random.normal(k5, (1, hidden_dim), jnp.float32)
        be1 = 0.05 * jax.random.normal(k6, (1, hidden_dim), jnp.float32)
        go = 1.0 + 0.05 * jax.random.normal(k7, (1, hidden_dim), jnp.float32)
        beo = 0.05 * jax.random.normal(k8, (1, hidden_dim), jnp.float32)
        params.append((w1t, b1, g1, be1, w2t, b2, go, beo))
    return params


if __name__ == "__main__":
    # small problem: 2 graphs x 32 nodes = 64 nodes, 8 input feats, 32 hidden
    num_layers = 3          # -> 2 GCN layers
    num_mlp_layers = 2
    input_dim = 8
    hidden_dim = 32
    n_graphs = 2
    nodes_per_graph = 32
    N = n_graphs * nodes_per_graph

    key = jax.random.PRNGKey(0)
    key, kx, ka = jax.random.split(key, 3)

    x = jax.random.normal(kx, (N, input_dim), jnp.float32)

    # block-diagonal adjacency with self-loops (dense, float32)
    a = (jax.random.uniform(ka, (N, N)) < 0.2).astype(jnp.float32)
    block_mask = jnp.kron(jnp.eye(n_graphs, dtype=jnp.float32),
                          jnp.ones((nodes_per_graph, nodes_per_graph), jnp.float32))
    adj = jnp.clip(a * block_mask + jnp.eye(N, dtype=jnp.float32), 0.0, 1.0)

    # average graph pooling matrix [n_graphs, N]  (sparse in L2D, dense here)
    graph_pool = jnp.kron(jnp.eye(n_graphs, dtype=jnp.float32),
                          jnp.full((1, nodes_per_graph), 1.0 / nodes_per_graph,
                                   jnp.float32))

    params = init_params(key, num_layers, num_mlp_layers, input_dim, hidden_dim)

    # pack + pad params once (lane-dense feature dim)
    d_pad = _round_up(max(input_dim, hidden_dim), LANE)
    w_all, p_all = pack_params(params, d_pad)

    pooled_h, h_nodes = graph_cnn_forward(x, graph_pool, adj, w_all, p_all,
                                          hidden_dim)
    jax.block_until_ready((pooled_h, h_nodes))

    ref_pooled, ref_nodes = graph_cnn_reference(x, graph_pool, adj, params)
    np.testing.assert_allclose(np.asarray(h_nodes), np.asarray(ref_nodes),
                               rtol=1e-4, atol=1e-4)
    np.testing.assert_allclose(np.asarray(pooled_h), np.asarray(ref_pooled),
                               rtol=1e-4, atol=1e-4)

    print("KERNEL_OK")
</pallas_src>

<mosaic_0001>
module attributes {stable_mosaic.version = 11 : i64} {
  func.func @fused_graphcnn_kernel(%arg0: i32, %arg1: memref<64x64xf32, #tpu.memory_space<vmem>>, %arg2: memref<64x128xf32, #tpu.memory_space<vmem>>, %arg3: memref<2x2x128x128xf32, #tpu.memory_space<vmem>>, %arg4: memref<2x8x128xf32, #tpu.memory_space<vmem>>, %arg5: memref<2x64xf32, #tpu.memory_space<vmem>>, %arg6: memref<2x128xf32, #tpu.memory_space<vmem>>, %arg7: memref<64x128xf32, #tpu.memory_space<vmem>>) attributes {dimension_semantics = [#tpu.dimension_semantics<arbitrary>], iteration_bounds = array<i64: 1>, scalar_prefetch = 0 : i64, scratch_operands = 0 : i64, tpu.core_type = #tpu.core_type<tc>, window_params = [{pipeline_mode = #tpu.pipeline_mode<synchronous>, transform_indices = @transform_0, window_bounds = array<i64: 64, 64>}, {pipeline_mode = #tpu.pipeline_mode<synchronous>, transform_indices = @transform_1, window_bounds = array<i64: 64, 128>}, {pipeline_mode = #tpu.pipeline_mode<synchronous>, transform_indices = @transform_2, window_bounds = array<i64: 2, 2, 128, 128>}, {pipeline_mode = #tpu.pipeline_mode<synchronous>, transform_indices = @transform_3, window_bounds = array<i64: 2, 8, 128>}, {pipeline_mode = #tpu.pipeline_mode<synchronous>, transform_indices = @transform_4, window_bounds = array<i64: 2, 64>}, {pipeline_mode = #tpu.pipeline_mode<synchronous>, transform_indices = @transform_5, window_bounds = array<i64: 2, 128>}, {pipeline_mode = #tpu.pipeline_mode<synchronous>, transform_indices = @transform_6, window_bounds = array<i64: 64, 128>}]} {
    %c0 = arith.constant 0 : index
    %c0_0 = arith.constant 0 : index
    %0 = vector.load %arg1[%c0, %c0_0] : memref<64x64xf32, #tpu.memory_space<vmem>>, vector<64x64xf32>
    %c0_1 = arith.constant 0 : index
    %c0_2 = arith.constant 0 : index
    %1 = vector.load %arg2[%c0_1, %c0_2] : memref<64x128xf32, #tpu.memory_space<vmem>>, vector<64x128xf32>
    %c0_3 = arith.constant 0 : index
    %c0_4 = arith.constant 0 : index
    %c0_5 = arith.constant 0 : index
    %c0_6 = arith.constant 0 : index
    %2 = vector.load %arg3[%c0_3, %c0_4, %c0_5, %c0_6] : memref<2x2x128x128xf32, #tpu.memory_space<vmem>>, vector<1x1x128x128xf32>
    %3 = vector.shape_cast %2 : vector<1x1x128x128xf32> to vector<128x128xf32>
    %c0_7 = arith.constant 0 : index
    %c1 = arith.constant 1 : index
    %c0_8 = arith.constant 0 : index
    %c0_9 = arith.constant 0 : index
    %4 = vector.load %arg3[%c0_7, %c1, %c0_8, %c0_9] : memref<2x2x128x128xf32, #tpu.memory_space<vmem>>, vector<1x1x128x128xf32>
    %5 = vector.shape_cast %4 : vector<1x1x128x128xf32> to vector<128x128xf32>
    %c0_10 = arith.constant 0 : index
    %c0_11 = arith.constant 0 : index
    %c0_12 = arith.constant 0 : index
    %6 = vector.load %arg4[%c0_10, %c0_11, %c0_12] : memref<2x8x128xf32, #tpu.memory_space<vmem>>, vector<1x1x128xf32>
    %7 = vector.shape_cast %6 : vector<1x1x128xf32> to vector<1x128xf32>
    %c0_13 = arith.constant 0 : index
    %c1_14 = arith.constant 1 : index
    %c0_15 = arith.constant 0 : index
    %8 = vector.load %arg4[%c0_13, %c1_14, %c0_15] : memref<2x8x128xf32, #tpu.memory_space<vmem>>, vector<1x1x128xf32>
    %9 = vector.shape_cast %8 : vector<1x1x128xf32> to vector<1x128xf32>
    %c0_16 = arith.constant 0 : index
    %c2 = arith.constant 2 : index
    %c0_17 = arith.constant 0 : index
    %10 = vector.load %arg4[%c0_16, %c2, %c0_17] : memref<2x8x128xf32, #tpu.memory_space<vmem>>, vector<1x1x128xf32>
    %11 = vector.shape_cast %10 : vector<1x1x128xf32> to vector<1x128xf32>
    %c0_18 = arith.constant 0 : index
    %c3 = arith.constant 3 : index
    %c0_19 = arith.constant 0 : index
    %12 = vector.load %arg4[%c0_18, %c3, %c0_19] : memref<2x8x128xf32, #tpu.memory_space<vmem>>, vector<1x1x128xf32>
    %13 = vector.shape_cast %12 : vector<1x1x128xf32> to vector<1x128xf32>
    %c0_20 = arith.constant 0 : index
    %c4 = arith.constant 4 : index
    %c0_21 = arith.constant 0 : index
    %14 = vector.load %arg4[%c0_20, %c4, %c0_21] : memref<2x8x128xf32, #tpu.memory_space<vmem>>, vector<1x1x128xf32>
    %15 = vector.shape_cast %14 : vector<1x1x128xf32> to vector<1x128xf32>
    %c0_22 = arith.constant 0 : index
    %c5 = arith.constant 5 : index
    %c0_23 = arith.constant 0 : index
    %16 = vector.load %arg4[%c0_22, %c5, %c0_23] : memref<2x8x128xf32, #tpu.memory_space<vmem>>, vector<1x1x128xf32>
    %17 = vector.shape_cast %16 : vector<1x1x128xf32> to vector<1x128xf32>
    %cst = arith.constant dense<0.000000e+00> : vector<64x128xf32>
    %18 = tpu.matmul %0, %1, %cst {dimension_numbers = #tpu.dot_dimension_numbers<[1], [0], [0], [1], [0, 0, 1, 1], [], []>} : vector<64x64xf32>, vector<64x128xf32>, vector<64x128xf32> -> vector<64x128xf32>
    %cst_24 = arith.constant dense<0.000000e+00> : vector<64x128xf32>
    %19 = tpu.matmul %18, %3, %cst_24 {dimension_numbers = #tpu.dot_dimension_numbers<[1], [0], [0], [1], [0, 0, 1, 1], [], []>} : vector<64x128xf32>, vector<128x128xf32>, vector<64x128xf32> -> vector<64x128xf32>
    %20 = vector.broadcast %7 : vector<1x128xf32> to vector<64x128xf32>
    %21 = arith.addf %19, %20 : vector<64x128xf32>
    %cst_25 = arith.constant dense<0.000000e+00> : vector<128xf32>
    %22 = vector.multi_reduction <add>, %21, %cst_25 [0] : vector<64x128xf32> to vector<128xf32>
    %23 = vector.shape_cast %22 : vector<128xf32> to vector<1x128xf32>
    %24 = arith.mulf %21, %21 : vector<64x128xf32>
    %cst_26 = arith.constant dense<0.000000e+00> : vector<128xf32>
    %25 = vector.multi_reduction <add>, %24, %cst_26 [0] : vector<64x128xf32> to vector<128xf32>
    %26 = vector.shape_cast %25 : vector<128xf32> to vector<1x128xf32>
    %cst_27 = arith.constant 1.562500e-02 : f32
    %27 = vector.broadcast %cst_27 : f32 to vector<1x128xf32>
    %28 = arith.mulf %23, %27 : vector<1x128xf32>
    %cst_28 = arith.constant 1.562500e-02 : f32
    %29 = vector.broadcast %cst_28 : f32 to vector<1x128xf32>
    %30 = arith.mulf %26, %29 : vector<1x128xf32>
    %31 = arith.mulf %28, %28 : vector<1x128xf32>
    %32 = arith.subf %30, %31 : vector<1x128xf32>
    %cst_29 = arith.constant 9.99999974E-6 : f32
    %33 = vector.broadcast %cst_29 : f32 to vector<1x128xf32>
    %34 = arith.addf %32, %33 : vector<1x128xf32>
    %35 = math.rsqrt %34 : vector<1x128xf32>
    %36 = arith.mulf %9, %35 : vector<1x128xf32>
    %37 = vector.broadcast %28 : vector<1x128xf32> to vector<64x128xf32>
    %38 = arith.subf %21, %37 : vector<64x128xf32>
    %39 = vector.broadcast %36 : vector<1x128xf32> to vector<64x128xf32>
    %40 = arith.mulf %38, %39 : vector<64x128xf32>
    %41 = vector.broadcast %11 : vector<1x128xf32> to vector<64x128xf32>
    %42 = arith.addf %40, %41 : vector<64x128xf32>
    %cst_30 = arith.constant 0.000000e+00 : f32
    %43 = vector.broadcast %cst_30 : f32 to vector<64x128xf32>
    %44 = arith.maximumf %42, %43 : vector<64x128xf32>
    %cst_31 = arith.constant dense<0.000000e+00> : vector<64x128xf32>
    %45 = tpu.matmul %44, %5, %cst_31 {dimension_numbers = #tpu.dot_dimension_numbers<[1], [0], [0], [1], [0, 0, 1, 1], [], []>} : vector<64x128xf32>, vector<128x128xf32>, vector<64x128xf32> -> vector<64x128xf32>
    %46 = vector.broadcast %13 : vector<1x128xf32> to vector<64x128xf32>
    %47 = arith.addf %45, %46 : vector<64x128xf32>
    %cst_32 = arith.constant dense<0.000000e+00> : vector<128xf32>
    %48 = vector.multi_reduction <add>, %47, %cst_32 [0] : vector<64x128xf32> to vector<128xf32>
    %49 = vector.shape_cast %48 : vector<128xf32> to vector<1x128xf32>
    %50 = arith.mulf %47, %47 : vector<64x128xf32>
    %cst_33 = arith.constant dense<0.000000e+00> : vector<128xf32>
    %51 = vector.multi_reduction <add>, %50, %cst_33 [0] : vector<64x128xf32> to vector<128xf32>
    %52 = vector.shape_cast %51 : vector<128xf32> to vector<1x128xf32>
    %cst_34 = arith.constant 1.562500e-02 : f32
    %53 = vector.broadcast %cst_34 : f32 to vector<1x128xf32>
    %54 = arith.mulf %49, %53 : vector<1x128xf32>
    %cst_35 = arith.constant 1.562500e-02 : f32
    %55 = vector.broadcast %cst_35 : f32 to vector<1x128xf32>
    %56 = arith.mulf %52, %55 : vector<1x128xf32>
    %57 = arith.mulf %54, %54 : vector<1x128xf32>
    %58 = arith.subf %56, %57 : vector<1x128xf32>
    %cst_36 = arith.constant 9.99999974E-6 : f32
    %59 = vector.broadcast %cst_36 : f32 to vector<1x128xf32>
    %60 = arith.addf %58, %59 : vector<1x128xf32>
    %61 = math.rsqrt %60 : vector<1x128xf32>
    %62 = arith.mulf %15, %61 : vector<1x128xf32>
    %63 = vector.broadcast %54 : vector<1x128xf32> to vector<64x128xf32>
    %64 = arith.subf %47, %63 : vector<64x128xf32>
    %65 = vector.broadcast %62 : vector<1x128xf32> to vector<64x128xf32>
    %66 = arith.mulf %64, %65 : vector<64x128xf32>
    %67 = vector.broadcast %17 : vector<1x128xf32> to vector<64x128xf32>
    %68 = arith.addf %66, %67 : vector<64x128xf32>
    %cst_37 = arith.constant 0.000000e+00 : f32
    %69 = vector.broadcast %cst_37 : f32 to vector<64x128xf32>
    %70 = arith.maximumf %68, %69 : vector<64x128xf32>
    %c1_38 = arith.constant 1 : index
    %c0_39 = arith.constant 0 : index
    %c0_40 = arith.constant 0 : index
    %c0_41 = arith.constant 0 : index
    %71 = vector.load %arg3[%c1_38, %c0_39, %c0_40, %c0_41] : memref<2x2x128x128xf32, #tpu.memory_space<vmem>>, vector<1x1x128x128xf32>
    %72 = vector.shape_cast %71 : vector<1x1x128x128xf32> to vector<128x128xf32>
    %c1_42 = arith.constant 1 : index
    %c1_43 = arith.constant 1 : index
    %c0_44 = arith.constant 0 : index
    %c0_45 = arith.constant 0 : index
    %73 = vector.load %arg3[%c1_42, %c1_43, %c0_44, %c0_45] : memref<2x2x128x128xf32, #tpu.memory_space<vmem>>, vector<1x1x128x128xf32>
    %74 = vector.shape_cast %73 : vector<1x1x128x128xf32> to vector<128x128xf32>
    %c1_46 = arith.constant 1 : index
    %c0_47 = arith.constant 0 : index
    %c0_48 = arith.constant 0 : index
    %75 = vector.load %arg4[%c1_46, %c0_47, %c0_48] : memref<2x8x128xf32, #tpu.memory_space<vmem>>, vector<1x1x128xf32>
    %76 = vector.shape_cast %75 : vector<1x1x128xf32> to vector<1x128xf32>
    %c1_49 = arith.constant 1 : index
    %c1_50 = arith.constant 1 : index
    %c0_51 = arith.constant 0 : index
    %77 = vector.load %arg4[%c1_49, %c1_50, %c0_51] : memref<2x8x128xf32, #tpu.memory_space<vmem>>, vector<1x1x128xf32>
    %78 = vector.shape_cast %77 : vector<1x1x128xf32> to vector<1x128xf32>
    %c1_52 = arith.constant 1 : index
    %c2_53 = arith.constant 2 : index
    %c0_54 = arith.constant 0 : index
    %79 = vector.load %arg4[%c1_52, %c2_53, %c0_54] : memref<2x8x128xf32, #tpu.memory_space<vmem>>, vector<1x1x128xf32>
    %80 = vector.shape_cast %79 : vector<1x1x128xf32> to vector<1x128xf32>
    %c1_55 = arith.constant 1 : index
    %c3_56 = arith.constant 3 : index
    %c0_57 = arith.constant 0 : index
    %81 = vector.load %arg4[%c1_55, %c3_56, %c0_57] : memref<2x8x128xf32, #tpu.memory_space<vmem>>, vector<1x1x128xf32>
    %82 = vector.shape_cast %81 : vector<1x1x128xf32> to vector<1x128xf32>
    %c1_58 = arith.constant 1 : index
    %c4_59 = arith.constant 4 : index
    %c0_60 = arith.constant 0 : index
    %83 = vector.load %arg4[%c1_58, %c4_59, %c0_60] : memref<2x8x128xf32, #tpu.memory_space<vmem>>, vector<1x1x128xf32>
    %84 = vector.shape_cast %83 : vector<1x1x128xf32> to vector<1x128xf32>
    %c1_61 = arith.constant 1 : index
    %c5_62 = arith.constant 5 : index
    %c0_63 = arith.constant 0 : index
    %85 = vector.load %arg4[%c1_61, %c5_62, %c0_63] : memref<2x8x128xf32, #tpu.memory_space<vmem>>, vector<1x1x128xf32>
    %86 = vector.shape_cast %85 : vector<1x1x128xf32> to vector<1x128xf32>
    %cst_64 = arith.constant dense<0.000000e+00> : vector<64x128xf32>
    %87 = tpu.matmul %0, %70, %cst_64 {dimension_numbers = #tpu.dot_dimension_numbers<[1], [0], [0], [1], [0, 0, 1, 1], [], []>} : vector<64x64xf32>, vector<64x128xf32>, vector<64x128xf32> -> vector<64x128xf32>
    %cst_65 = arith.constant dense<0.000000e+00> : vector<64x128xf32>
    %88 = tpu.matmul %87, %72, %cst_65 {dimension_numbers = #tpu.dot_dimension_numbers<[1], [0], [0], [1], [0, 0, 1, 1], [], []>} : vector<64x128xf32>, vector<128x128xf32>, vector<64x128xf32> -> vector<64x128xf32>
    %89 = vector.broadcast %76 : vector<1x128xf32> to vector<64x128xf32>
    %90 = arith.addf %88, %89 : vector<64x128xf32>
    %cst_66 = arith.constant dense<0.000000e+00> : vector<128xf32>
    %91 = vector.multi_reduction <add>, %90, %cst_66 [0] : vector<64x128xf32> to vector<128xf32>
    %92 = vector.shape_cast %91 : vector<128xf32> to vector<1x128xf32>
    %93 = arith.mulf %90, %90 : vector<64x128xf32>
    %cst_67 = arith.constant dense<0.000000e+00> : vector<128xf32>
    %94 = vector.multi_reduction <add>, %93, %cst_67 [0] : vector<64x128xf32> to vector<128xf32>
    %95 = vector.shape_cast %94 : vector<128xf32> to vector<1x128xf32>
    %cst_68 = arith.constant 1.562500e-02 : f32
    %96 = vector.broadcast %cst_68 : f32 to vector<1x128xf32>
    %97 = arith.mulf %92, %96 : vector<1x128xf32>
    %cst_69 = arith.constant 1.562500e-02 : f32
    %98 = vector.broadcast %cst_69 : f32 to vector<1x128xf32>
    %99 = arith.mulf %95, %98 : vector<1x128xf32>
    %100 = arith.mulf %97, %97 : vector<1x128xf32>
    %101 = arith.subf %99, %100 : vector<1x128xf32>
    %cst_70 = arith.constant 9.99999974E-6 : f32
    %102 = vector.broadcast %cst_70 : f32 to vector<1x128xf32>
    %103 = arith.addf %101, %102 : vector<1x128xf32>
    %104 = math.rsqrt %103 : vector<1x128xf32>
    %105 = arith.mulf %78, %104 : vector<1x128xf32>
    %106 = vector.broadcast %97 : vector<1x128xf32> to vector<64x128xf32>
    %107 = arith.subf %90, %106 : vector<64x128xf32>
    %108 = vector.broadcast %105 : vector<1x128xf32> to vector<64x128xf32>
    %109 = arith.mulf %107, %108 : vector<64x128xf32>
    %110 = vector.broadcast %80 : vector<1x128xf32> to vector<64x128xf32>
    %111 = arith.addf %109, %110 : vector<64x128xf32>
    %cst_71 = arith.constant 0.000000e+00 : f32
    %112 = vector.broadcast %cst_71 : f32 to vector<64x128xf32>
    %113 = arith.maximumf %111, %112 : vector<64x128xf32>
    %cst_72 = arith.constant dense<0.000000e+00> : vector<64x128xf32>
    %114 = tpu.matmul %113, %74, %cst_72 {dimension_numbers = #tpu.dot_dimension_numbers<[1], [0], [0], [1], [0, 0, 1, 1], [], []>} : vector<64x128xf32>, vector<128x128xf32>, vector<64x128xf32> -> vector<64x128xf32>
    %115 = vector.broadcast %82 : vector<1x128xf32> to vector<64x128xf32>
    %116 = arith.addf %114, %115 : vector<64x128xf32>
    %cst_73 = arith.constant dense<0.000000e+00> : vector<128xf32>
    %117 = vector.multi_reduction <add>, %116, %cst_73 [0] : vector<64x128xf32> to vector<128xf32>
    %118 = vector.shape_cast %117 : vector<128xf32> to vector<1x128xf32>
    %119 = arith.mulf %116, %116 : vector<64x128xf32>
    %cst_74 = arith.constant dense<0.000000e+00> : vector<128xf32>
    %120 = vector.multi_reduction <add>, %119, %cst_74 [0] : vector<64x128xf32> to vector<128xf32>
    %121 = vector.shape_cast %120 : vector<128xf32> to vector<1x128xf32>
    %cst_75 = arith.constant 1.562500e-02 : f32
    %122 = vector.broadcast %cst_75 : f32 to vector<1x128xf32>
    %123 = arith.mulf %118, %122 : vector<1x128xf32>
    %cst_76 = arith.constant 1.562500e-02 : f32
    %124 = vector.broadcast %cst_76 : f32 to vector<1x128xf32>
    %125 = arith.mulf %121, %124 : vector<1x128xf32>
    %126 = arith.mulf %123, %123 : vector<1x128xf32>
    %127 = arith.subf %125, %126 : vector<1x128xf32>
    %cst_77 = arith.constant 9.99999974E-6 : f32
    %128 = vector.broadcast %cst_77 : f32 to vector<1x128xf32>
    %129 = arith.addf %127, %128 : vector<1x128xf32>
    %130 = math.rsqrt %129 : vector<1x128xf32>
    %131 = arith.mulf %84, %130 : vector<1x128xf32>
    %132 = vector.broadcast %123 : vector<1x128xf32> to vector<64x128xf32>
    %133 = arith.subf %116, %132 : vector<64x128xf32>
    %134 = vector.broadcast %131 : vector<1x128xf32> to vector<64x128xf32>
    %135 = arith.mulf %133, %134 : vector<64x128xf32>
    %136 = vector.broadcast %86 : vector<1x128xf32> to vector<64x128xf32>
    %137 = arith.addf %135, %136 : vector<64x128xf32>
    %cst_78 = arith.constant 0.000000e+00 : f32
    %138 = vector.broadcast %cst_78 : f32 to vector<64x128xf32>
    %139 = arith.maximumf %137, %138 : vector<64x128xf32>
    %c0_79 = arith.constant 0 : index
    %c0_80 = arith.constant 0 : index
    %140 = vector.load %arg7[%c0_79, %c0_80] : memref<64x128xf32, #tpu.memory_space<vmem>>, vector<64x128xf32>
    tpu.vector_store %arg7[%c0_79, %c0_80], %139 {strides = array<i32>} : memref<64x128xf32, #tpu.memory_space<vmem>>, vector<64x128xf32>,
    %c0_81 = arith.constant 0 : index
    %c0_82 = arith.constant 0 : index
    %141 = vector.load %arg5[%c0_81, %c0_82] : memref<2x64xf32, #tpu.memory_space<vmem>>, vector<2x64xf32>
    %cst_83 = arith.constant dense<0.000000e+00> : vector<2x128xf32>
    %142 = tpu.matmul %141, %139, %cst_83 {dimension_numbers = #tpu.dot_dimension_numbers<[1], [0], [0], [1], [0, 0, 1, 1], [], []>} : vector<2x64xf32>, vector<64x128xf32>, vector<2x128xf32> -> vector<2x128xf32>
    %c0_84 = arith.constant 0 : index
    %c0_85 = arith.constant 0 : index
    %143 = vector.load %arg6[%c0_84, %c0_85] : memref<2x128xf32, #tpu.memory_space<vmem>>, vector<2x128xf32>
    tpu.vector_store %arg6[%c0_84, %c0_85], %142 {strides = array<i32>} : memref<2x128xf32, #tpu.memory_space<vmem>>, vector<2x128xf32>,
    return
  }
  func.func @transform_0(%arg0: i32) -> (i32, i32) {
    %c0_i32 = arith.constant 0 : i32
    %c0_i32_0 = arith.constant 0 : i32
    %c0_i32_1 = arith.constant 0 : i32
    return %c0_i32, %c0_i32_0 : i32, i32
  }
  func.func @transform_1(%arg0: i32) -> (i32, i32) {
    %c0_i32 = arith.constant 0 : i32
    %c0_i32_0 = arith.constant 0 : i32
    %c0_i32_1 = arith.constant 0 : i32
    return %c0_i32, %c0_i32_0 : i32, i32
  }
  func.func @transform_2(%arg0: i32) -> (i32, i32, i32, i32) {
    %c0_i32 = arith.constant 0 : i32
    %c0_i32_0 = arith.constant 0 : i32
    %c0_i32_1 = arith.constant 0 : i32
    %c0_i32_2 = arith.constant 0 : i32
    %c0_i32_3 = arith.constant 0 : i32
    return %c0_i32, %c0_i32_0, %c0_i32_1, %c0_i32_2 : i32, i32, i32, i32
  }
  func.func @transform_3(%arg0: i32) -> (i32, i32, i32) {
    %c0_i32 = arith.constant 0 : i32
    %c0_i32_0 = arith.constant 0 : i32
    %c0_i32_1 = arith.constant 0 : i32
    %c0_i32_2 = arith.constant 0 : i32
    return %c0_i32, %c0_i32_0, %c0_i32_1 : i32, i32, i32
  }
  func.func @transform_4(%arg0: i32) -> (i32, i32) {
    %c0_i32 = arith.constant 0 : i32
    %c0_i32_0 = arith.constant 0 : i32
    %c0_i32_1 = arith.constant 0 : i32
    return %c0_i32, %c0_i32_0 : i32, i32
  }
  func.func @transform_5(%arg0: i32) -> (i32, i32) {
    %c0_i32 = arith.constant 0 : i32
    %c0_i32_0 = arith.constant 0 : i32
    %c0_i32_1 = arith.constant 0 : i32
    return %c0_i32, %c0_i32_0 : i32, i32
  }
  func.func @transform_6(%arg0: i32) -> (i32, i32) {
    %c0_i32 = arith.constant 0 : i32
    %c0_i32_0 = arith.constant 0 : i32
    %c0_i32_1 = arith.constant 0 : i32
    return %c0_i32, %c0_i32_0 : i32, i32
  }
}

</mosaic_0001>

<llo_original>
// kernel: graph_cnn_forward.1
$region0: #{graph_cnn_forward.1}
  #allocation0 [shape = 'u32[]', space=smem, size = 0x4, offset = 0x4, fixed_abs, tag = 'smem constant byte address 0x4 - core index']
  #allocation1 [shape = 'u32[144,128]{1,0:T(1,128)}', space=vmem, size = 0x12000, scoped, tag = 'internal scratch']
  %s0 = inlined_call_operand.vmem [shape: f32[64,64], index: 0, kind: input, shape index: {}]
  %s1 = inlined_call_operand.vmem [shape: f32[64,128], index: 1, kind: input, shape index: {}]
  %s2 = inlined_call_operand.hbm [shape: f32[2,2,128,128], index: 2, kind: input, shape index: {}]
  %s3 = inlined_call_operand.vmem [shape: f32[2,8,128], index: 3, kind: input, shape index: {}]
  %s4 = inlined_call_operand.vmem [shape: f32[2,64], index: 4, kind: input, shape index: {}]
  %s5 = inlined_call_operand.hbm [shape: f32[2,128], index: 5, kind: output, shape index: {0}]
  %s6 = inlined_call_operand.vmem [shape: f32[64,128], index: 6, kind: output, shape index: {1}]
  %7 = xla_tuple %s5, %s6
  %s8 = sld [smem:[#allocation0]]
  $region42: #{graph_cnn_forward.1} parent=0
    _
  %s10 = ssub.s32 1, %s8
  %s11 = scalar_select 0, %s10, %s8
  $region1: #{graph_cnn_forward.1} parent=0
    #allocation2 [shape = 'u8[262144]{0}', space=vmem, size = 0x40000, scoped, tag = 'input window, operand 2, single buffered']
    #allocation3 [shape = 's32[1]{0}', space=sflag, size = 0x4, scoped, tag = 'scoped memory for graph_cnn_forward.1']
    #allocation4 [shape = 's32[1]{0}', space=sflag, size = 0x4, scoped, tag = 'scoped memory for graph_cnn_forward.1']
    #allocation5 [shape = 'u8[1024]{0}', space=vmem, size = 0x400, scoped, tag = 'output window, operand 0, single buffered']
    %12 = vsyncpa [#allocation3], 0
    %13 = vsyncpa [#allocation4], 0
    // Predicated region
    $region2: #{graph_cnn_forward.1} parent=1 // pred_check
      _
    $region3: #{graph_cnn_forward.1} parent=1 // pred_check_branch
      %15 = sbr.rel (0) target = $region5
    $region4: #{graph_cnn_forward.1} parent=1 // pred_region
      _
    $region5: #{graph_cnn_forward.1} parent=1 // pred_fallthru
      _
    // Predicated region
    $region6: #{graph_cnn_forward.1} parent=1 // pred_check
      _
    $region7: #{graph_cnn_forward.1} parent=1 // pred_check_branch
      %17 = sbr.rel (0) target = $region9
    $region8: #{graph_cnn_forward.1} parent=1 // pred_region
      _
    $region9: #{graph_cnn_forward.1} parent=1 // pred_fallthru
      _
    // Predicated region
    $region10: #{graph_cnn_forward.1} parent=1 // pred_check
      _
    $region11: #{graph_cnn_forward.1} parent=1 // pred_check_branch
      %19 = sbr.rel (0) target = $region13
    $region12: #{graph_cnn_forward.1} parent=1 // pred_region
      %s21 = ssub.s32 8192, 8192
      %22 = vsyncadd [#allocation3], %s21
      %s23 = sshll.u32 [#allocation2], 4
      %s24 = int_to_ptr.vmem [resolvable:$true] %s23
      %29 = dma.hbm_to_vmem [thread:$0]  %s2, 8192, %s24, [#allocation3], 128, 128, 8
    $region13: #{graph_cnn_forward.1} parent=1 // pred_fallthru
      _
    // Predicated region
    $region14: #{graph_cnn_forward.1} parent=1 // pred_check
      _
    $region15: #{graph_cnn_forward.1} parent=1 // pred_check_branch
      %31 = sbr.rel (0) target = $region17
    $region16: #{graph_cnn_forward.1} parent=1 // pred_region
      _
    $region17: #{graph_cnn_forward.1} parent=1 // pred_fallthru
      _
    // Predicated region
    $region18: #{graph_cnn_forward.1} parent=1 // pred_check
      _
    $region19: #{graph_cnn_forward.1} parent=1 // pred_check_branch
      %33 = sbr.rel (0) target = $region21
    $region20: #{graph_cnn_forward.1} parent=1 // pred_region
      _
    $region21: #{graph_cnn_forward.1} parent=1 // pred_fallthru
      _
    // Predicated region
    $region22: #{graph_cnn_forward.1} parent=1 // pred_check
      _
    $region23: #{graph_cnn_forward.1} parent=1 // pred_check_branch
      %35 = sbr.rel (0) target = $region25
    $region24: #{graph_cnn_forward.1} parent=1 // pred_region
      %36 = dma.done [#allocation3], 8192
    $region25: #{graph_cnn_forward.1} parent=1 // pred_fallthru
      _
    %v37 = vld [vmem:[%s0] sm:$0xff]
    %v38 = vld [vmem:[%s0 + $0x8] sm:$0xff]
    %v39 = vld [vmem:[%s0 + $0x10] sm:$0xff]
    %v40 = vld [vmem:[%s0 + $0x18] sm:$0xff]
    %v41 = vld [vmem:[%s0 + $0x20] sm:$0xff]
    %v42 = vld [vmem:[%s0 + $0x28] sm:$0xff]
    %v43 = vld [vmem:[%s0 + $0x30] sm:$0xff]
    %v44 = vld [vmem:[%s0 + $0x38] sm:$0xff]
    %v45 = vld [vmem:[%s1] sm:$0xff]
    %v46 = vld [vmem:[%s1 + $0x8] sm:$0xff]
    %v47 = vld [vmem:[%s1 + $0x10] sm:$0xff]
    %v48 = vld [vmem:[%s1 + $0x18] sm:$0xff]
    %v49 = vld [vmem:[%s1 + $0x20] sm:$0xff]
    %v50 = vld [vmem:[%s1 + $0x28] sm:$0xff]
    %v51 = vld [vmem:[%s1 + $0x30] sm:$0xff]
    %v52 = vld [vmem:[%s1 + $0x38] sm:$0xff]
    %v53 = vld [vmem:[#allocation2] sm:$0xff]
    %v54 = vld [vmem:[#allocation2 + $0x8] sm:$0xff]
    %v55 = vld [vmem:[#allocation2 + $0x10] sm:$0xff]
    %v56 = vld [vmem:[#allocation2 + $0x18] sm:$0xff]
    %v57 = vld [vmem:[#allocation2 + $0x20] sm:$0xff]
    %v58 = vld [vmem:[#allocation2 + $0x28] sm:$0xff]
    %v59 = vld [vmem:[#allocation2 + $0x30] sm:$0xff]
    %v60 = vld [vmem:[#allocation2 + $0x38] sm:$0xff]
    %v61 = vld [vmem:[#allocation2 + $0x40] sm:$0xff]
    %v62 = vld [vmem:[#allocation2 + $0x48] sm:$0xff]
    %v63 = vld [vmem:[#allocation2 + $0x50] sm:$0xff]
    %v64 = vld [vmem:[#allocation2 + $0x58] sm:$0xff]
    %v65 = vld [vmem:[#allocation2 + $0x60] sm:$0xff]
    %v66 = vld [vmem:[#allocation2 + $0x68] sm:$0xff]
    %v67 = vld [vmem:[#allocation2 + $0x70] sm:$0xff]
    %v68 = vld [vmem:[#allocation2 + $0x78] sm:$0xff]
    %s69 = scalar_lea.vmem [#allocation2], 128
    %v70 = vld [vmem:[%s69] sm:$0xff]
    %v71 = vld [vmem:[%s69 + $0x8] sm:$0xff]
    %v72 = vld [vmem:[%s69 + $0x10] sm:$0xff]
    %v73 = vld [vmem:[%s69 + $0x18] sm:$0xff]
    %v74 = vld [vmem:[%s69 + $0x20] sm:$0xff]
    %v75 = vld [vmem:[%s69 + $0x28] sm:$0xff]
    %v76 = vld [vmem:[%s69 + $0x30] sm:$0xff]
    %v77 = vld [vmem:[%s69 + $0x38] sm:$0xff]
    %v78 = vld [vmem:[%s69 + $0x40] sm:$0xff]
    %v79 = vld [vmem:[%s69 + $0x48] sm:$0xff]
    %v80 = vld [vmem:[%s69 + $0x50] sm:$0xff]
    %v81 = vld [vmem:[%s69 + $0x58] sm:$0xff]
    %v82 = vld [vmem:[%s69 + $0x60] sm:$0xff]
    %v83 = vld [vmem:[%s69 + $0x68] sm:$0xff]
    %v84 = vld [vmem:[%s69 + $0x70] sm:$0xff]
    %v85 = vld [vmem:[%s69 + $0x78] sm:$0xff]
    %v86 = vld [vmem:[%s3] sm:$0x1]
    %v87 = vld [vmem:[%s3 + $0x1] sm:$0x1]
    %v88 = vld [vmem:[%s3 + $0x2] sm:$0x1]
    %v89 = vld [vmem:[%s3 + $0x3] sm:$0x1]
    %v90 = vld [vmem:[%s3 + $0x4] sm:$0x1]
    %v91 = vld [vmem:[%s3 + $0x5] sm:$0x1]
    %vm92 = vcmask 523264
    %v94 = vsel %vm92, %v37, 0
    %v97 = vsel %vm92, %v38, 0
    %v100 = vsel %vm92, %v39, 0
    %v103 = vsel %vm92, %v40, 0
    %v106 = vsel %vm92, %v41, 0
    %v109 = vsel %vm92, %v42, 0
    %v112 = vsel %vm92, %v43, 0
    %v115 = vsel %vm92, %v44, 0
    %117 = vmatprep.subr.mxu0 0.0
    %118 = vmatpush1.msra.mxu0 %v45
    %119 = vmatprep.subr.mxu0 0.0
    %120 = vmatpush1.msra.mxu0 %v46
    %121 = vmatprep.subr.mxu0 0.0
    %122 = vmatpush1.msra.mxu0 %v47
    %123 = vmatprep.subr.mxu0 0.0
    %124 = vmatpush1.msra.mxu0 %v48
    %125 = vmatprep.subr.mxu0 0.0
    %126 = vmatpush1.msra.mxu0 %v49
    %127 = vmatprep.subr.mxu0 0.0
    %128 = vmatpush1.msra.mxu0 %v50
    %129 = vmatprep.subr.mxu0 0.0
    %130 = vmatpush1.msra.mxu0 %v51
    %131 = vmatprep.subr.mxu0 0.0
    %132 = vmatpush1.msra.mxu0 %v52
    %133 = vmatprep.subr.mxu0 0.0
    %134 = vmatpush1.msra.mxu0 0.0
    %135 = vmatprep.subr.mxu0 0.0
    %136 = vmatpush1.msra.mxu0 0.0
    %137 = vmatprep.subr.mxu0 0.0
    %138 = vmatpush1.msra.mxu0 0.0
    %139 = vmatprep.subr.mxu0 0.0
    %140 = vmatpush1.msra.mxu0 0.0
    %141 = vmatprep.subr.mxu0 0.0
    %142 = vmatpush1.msra.mxu0 0.0
    %143 = vmatprep.subr.mxu0 0.0
    %144 = vmatpush1.msra.mxu0 0.0
    %145 = vmatprep.subr.mxu0 0.0
    %146 = vmatpush1.msra.mxu0 0.0
    %147 = vmatprep.subr.mxu0 0.0
    %148 = vmatpush1.msra.mxu0 0.0
    %149 = vmatprep.subr.mxu0 0.0
    %150 = vmatpush1.msra.mxu0 0.0
    %151 = vmatprep.subr.mxu0 0.0
    %152 = vmatpush1.msra.mxu0 0.0
    %153 = vmatprep.subr.mxu0 0.0
    %154 = vmatpush1.msra.mxu0 0.0
    %155 = vmatprep.subr.mxu0 0.0
    %156 = vmatpush1.msra.mxu0 0.0
    %157 = vmatprep.subr.mxu0 0.0
    %158 = vmatpush1.msra.mxu0 0.0
    %159 = vmatprep.subr.mxu0 0.0
    %160 = vmatpush1.msra.mxu0 0.0
    %161 = vmatprep.subr.mxu0 0.0
    %162 = vmatpush1.msra.mxu0 0.0
    %163 = vmatprep.subr.mxu0 0.0
    %164 = vmatpush1.msra.mxu0 0.0
    %165 = vmatprep.subr.mxu0 0.0
    %166 = vmatpush1.msra.mxu0 0.0
    %167 = vmatprep.subr.mxu0 0.0
    %168 = vmatpush1.msra.mxu0 0.0
    %169 = vmatprep.subr.mxu0 0.0
    %170 = vmatpush1.msra.mxu0 0.0
    %171 = vmatprep.subr.mxu0 0.0
    %172 = vmatpush1.msra.mxu0 0.0
    %173 = vmatprep.subr.mxu0 0.0
    %174 = vmatpush1.msra.mxu0 0.0
    %175 = vmatprep.subr.mxu0 0.0
    %176 = vmatpush1.msra.mxu0 0.0
    %177 = vmatprep.subr.mxu0 0.0
    %178 = vmatpush1.msra.mxu0 0.0
    %179 = vmatprep.subr.mxu0 0.0
    %180 = vmatpush1.msra.mxu0 0.0
    %181 = vmatprep.mubr.f32.mxu0 0.0
    %182 = vmatmul.mubr.f32.gmra.mrb[0].mxu0 %v94
    %v183 = vpop.f32.mrb[0].mxu0
    %v184 = vadd.f32 0.0, %v183
    %v185 = vpop.f32.mrb[0].mxu0
    %186 = vmatprep.mubr.f32.mxu0 0.0
    %187 = vmatmul.mubr.f32.gmra.mrb[0].mxu0 %v97
    %v188 = vpop.f32.mrb[0].mxu0
    %v189 = vadd.f32 0.0, %v188
    %v190 = vpop.f32.mrb[0].mxu0
    %191 = vmatprep.mubr.f32.mxu0 0.0
    %192 = vmatmul.mubr.f32.gmra.mrb[0].mxu0 %v100
    %v193 = vpop.f32.mrb[0].mxu0
    %v194 = vadd.f32 0.0, %v193
    %v195 = vpop.f32.mrb[0].mxu0
    %196 = vmatprep.mubr.f32.mxu0 0.0
    %197 = vmatmul.mubr.f32.gmra.mrb[0].mxu0 %v103
    %v198 = vpop.f32.mrb[0].mxu0
    %v199 = vadd.f32 0.0, %v198
    %v200 = vpop.f32.mrb[0].mxu0
    %201 = vmatprep.mubr.f32.mxu0 0.0
    %202 = vmatmul.mubr.f32.gmra.mrb[0].mxu0 %v106
    %v203 = vpop.f32.mrb[0].mxu0
    %v204 = vadd.f32 0.0, %v203
    %v205 = vpop.f32.mrb[0].mxu0
    %206 = vmatprep.mubr.f32.mxu0 0.0
    %207 = vmatmul.mubr.f32.gmra.mrb[0].mxu0 %v109
    %v208 = vpop.f32.mrb[0].mxu0
    %v209 = vadd.f32 0.0, %v208
    %v210 = vpop.f32.mrb[0].mxu0
    %211 = vmatprep.mubr.f32.mxu0 0.0
    %212 = vmatmul.mubr.f32.gmra.mrb[0].mxu0 %v112
    %v213 = vpop.f32.mrb[0].mxu0
    %v214 = vadd.f32 0.0, %v213
    %v215 = vpop.f32.mrb[0].mxu0
    %216 = vmatprep.mubr.f32.mxu0 0.0
    %217 = vmatmul.mubr.f32.gmra.mrb[0].mxu0 %v115
    %v218 = vpop.f32.mrb[0].mxu0
    %v219 = vadd.f32 0.0, %v218
    %v220 = vpop.f32.mrb[0].mxu0
    %221 = vdwg.mxu0
    %v222 = vlaneseq
    %v223 = vshrl.u32 %v222, 7
    %v224 = vsub.s32 0, %v223
    %v225 = vrot.slane %v86, %v224
    %226 = vmatprep.subr.mxu0 0.0
    %227 = vmatpush1.msra.mxu0 %v53
    %228 = vmatprep.subr.mxu0 0.0
    %229 = vmatpush1.msra.mxu0 %v54
    %230 = vmatprep.subr.mxu0 0.0
    %231 = vmatpush1.msra.mxu0 %v55
    %232 = vmatprep.subr.mxu0 0.0
    %233 = vmatpush1.msra.mxu0 %v56
    %234 = vmatprep.subr.mxu0 0.0
    %235 = vmatpush1.msra.mxu0 %v57
    %236 = vmatprep.subr.mxu0 0.0
    %237 = vmatpush1.msra.mxu0 %v58
    %238 = vmatprep.subr.mxu0 0.0
    %239 = vmatpush1.msra.mxu0 %v59
    %240 = vmatprep.subr.mxu0 0.0
    %241 = vmatpush1.msra.mxu0 %v60
    %242 = vmatprep.subr.mxu0 0.0
    %243 = vmatpush1.msra.mxu0 %v61
    %244 = vmatprep.subr.mxu0 0.0
    %245 = vmatpush1.msra.mxu0 %v62
    %246 = vmatprep.subr.mxu0 0.0
    %247 = vmatpush1.msra.mxu0 %v63
    %248 = vmatprep.subr.mxu0 0.0
    %249 = vmatpush1.msra.mxu0 %v64
    %250 = vmatprep.subr.mxu0 0.0
    %251 = vmatpush1.msra.mxu0 %v65
    %252 = vmatprep.subr.mxu0 0.0
    %253 = vmatpush1.msra.mxu0 %v66
    %254 = vmatprep.subr.mxu0 0.0
    %255 = vmatpush1.msra.mxu0 %v67
    %256 = vmatprep.subr.mxu0 0.0
    %257 = vmatpush1.msra.mxu0 %v68
    %258 = vmatprep.subr.mxu0 0.0
    %259 = vmatpush1.msra.mxu0 0.0
    %260 = vmatprep.subr.mxu0 0.0
    %261 = vmatpush1.msra.mxu0 0.0
    %262 = vmatprep.subr.mxu0 0.0
    %263 = vmatpush1.msra.mxu0 0.0
    %264 = vmatprep.subr.mxu0 0.0
    %265 = vmatpush1.msra.mxu0 0.0
    %266 = vmatprep.subr.mxu0 0.0
    %267 = vmatpush1.msra.mxu0 0.0
    %268 = vmatprep.subr.mxu0 0.0
    %269 = vmatpush1.msra.mxu0 0.0
    %270 = vmatprep.subr.mxu0 0.0
    %271 = vmatpush1.msra.mxu0 0.0
    %272 = vmatprep.subr.mxu0 0.0
    %273 = vmatpush1.msra.mxu0 0.0
    %274 = vmatprep.subr.mxu0 0.0
    %275 = vmatpush1.msra.mxu0 0.0
    %276 = vmatprep.subr.mxu0 0.0
    %277 = vmatpush1.msra.mxu0 0.0
    %278 = vmatprep.subr.mxu0 0.0
    %279 = vmatpush1.msra.mxu0 0.0
    %280 = vmatprep.subr.mxu0 0.0
    %281 = vmatpush1.msra.mxu0 0.0
    %282 = vmatprep.subr.mxu0 0.0
    %283 = vmatpush1.msra.mxu0 0.0
    %284 = vmatprep.subr.mxu0 0.0
    %285 = vmatpush1.msra.mxu0 0.0
    %286 = vmatprep.subr.mxu0 0.0
    %287 = vmatpush1.msra.mxu0 0.0
    %288 = vmatprep.subr.mxu0 0.0
    %289 = vmatpush1.msra.mxu0 0.0
    %290 = vmatprep.mubr.f32.mxu0 0.0
    %291 = vmatmul.mubr.f32.gmra.mrb[0].mxu0 %v184
    %v292 = vpop.f32.mrb[0].mxu0
    %v293 = vadd.f32 %v225, %v292
    %v294 = vpop.f32.mrb[0].mxu0
    %295 = vmatprep.mubr.f32.mxu0 0.0
    %296 = vmatmul.mubr.f32.gmra.mrb[0].mxu0 %v189
    %v297 = vpop.f32.mrb[0].mxu0
    %v298 = vadd.f32 %v225, %v297
    %v299 = vpop.f32.mrb[0].mxu0
    %300 = vmatprep.mubr.f32.mxu0 0.0
    %301 = vmatmul.mubr.f32.gmra.mrb[0].mxu0 %v194
    %v302 = vpop.f32.mrb[0].mxu0
    %v303 = vadd.f32 %v225, %v302
    %v304 = vpop.f32.mrb[0].mxu0
    %305 = vmatprep.mubr.f32.mxu0 0.0
    %306 = vmatmul.mubr.f32.gmra.mrb[0].mxu0 %v199
    %v307 = vpop.f32.mrb[0].mxu0
    %v308 = vadd.f32 %v225, %v307
    %v309 = vpop.f32.mrb[0].mxu0
    %310 = vmatprep.mubr.f32.mxu0 0.0
    %311 = vmatmul.mubr.f32.gmra.mrb[0].mxu0 %v204
    %v312 = vpop.f32.mrb[0].mxu0
    %v313 = vadd.f32 %v225, %v312
    %v314 = vpop.f32.mrb[0].mxu0
    %315 = vmatprep.mubr.f32.mxu0 0.0
    %316 = vmatmul.mubr.f32.gmra.mrb[0].mxu0 %v209
    %v317 = vpop.f32.mrb[0].mxu0
    %v318 = vadd.f32 %v225, %v317
    %v319 = vpop.f32.mrb[0].mxu0
    %320 = vmatprep.mubr.f32.mxu0 0.0
    %321 = vmatmul.mubr.f32.gmra.mrb[0].mxu0 %v214
    %v322 = vpop.f32.mrb[0].mxu0
    %v323 = vadd.f32 %v225, %v322
    %v324 = vpop.f32.mrb[0].mxu0
    %325 = vmatprep.mubr.f32.mxu0 0.0
    %326 = vmatmul.mubr.f32.gmra.mrb[0].mxu0 %v219
    %v327 = vpop.f32.mrb[0].mxu0
    %v328 = vadd.f32 %v225, %v327
    %v329 = vpop.f32.mrb[0].mxu0
    %330 = vdwg.mxu0
    %v331 = vadd.f32 %v293, %v298
    %v332 = vadd.f32 %v331, %v303
    %v333 = vadd.f32 %v332, %v308
    %v334 = vadd.f32 %v333, %v313
    %v335 = vadd.f32 %v334, %v318
    %v336 = vadd.f32 %v335, %v323
    %v337 = vadd.f32 %v336, %v328
    %v338 = vrot.slane %v337, 4
    %v339 = vadd.f32 %v337, %v338
    %v340 = vrot.slane %v339, 2
    %v341 = vadd.f32 %v339, %v340
    %v342 = vrot.slane %v341, 1
    %v343 = vadd.f32 %v341, %v342
    %v344 = vmul.f32 %v293, %v293
    %v345 = vmul.f32 %v298, %v298
    %v346 = vmul.f32 %v303, %v303
    %v347 = vmul.f32 %v308, %v308
    %v348 = vmul.f32 %v313, %v313
    %v349 = vmul.f32 %v318, %v318
    %v350 = vmul.f32 %v323, %v323
    %v351 = vmul.f32 %v328, %v328
    %v352 = vadd.f32 %v344, %v345
    %v353 = vadd.f32 %v352, %v346
    %v354 = vadd.f32 %v353, %v347
    %v355 = vadd.f32 %v354, %v348
    %v356 = vadd.f32 %v355, %v349
    %v357 = vadd.f32 %v356, %v350
    %v358 = vadd.f32 %v357, %v351
    %v359 = vrot.slane %v358, 4
    %v360 = vadd.f32 %v358, %v359
    %v361 = vrot.slane %v360, 2
    %v362 = vadd.f32 %v360, %v361
    %v363 = vrot.slane %v362, 1
    %v364 = vadd.f32 %v362, %v363
    %v365 = vmul.f32 %v343, 0.015625
    %v366 = vmul.f32 %v364, 0.015625
    %v367 = vmul.f32 %v365, %v365
    %v368 = vsub.f32 %v366, %v367
    %v369 = vadd.f32 %v368, 1e-05
    %v370 = vrsqrt.pop %v369
    %v371 = vmul.f32 %v87, %v370
    %v372 = vsub.f32 %v293, %v365
    %v373 = vsub.f32 %v298, %v365
    %v374 = vsub.f32 %v303, %v365
    %v375 = vsub.f32 %v308, %v365
    %v376 = vsub.f32 %v313, %v365
    %v377 = vsub.f32 %v318, %v365
    %v378 = vsub.f32 %v323, %v365
    %v379 = vsub.f32 %v328, %v365
    %v380 = vlaneseq
    %v381 = vshrl.u32 %v380, 7
    %v382 = vsub.s32 0, %v381
    %v383 = vrot.slane %v371, %v382
    %v384 = vmul.f32 %v372, %v383
    %v385 = vmul.f32 %v373, %v383
    %v386 = vmul.f32 %v374, %v383
    %v387 = vmul.f32 %v375, %v383
    %v388 = vmul.f32 %v376, %v383
    %v389 = vmul.f32 %v377, %v383
    %v390 = vmul.f32 %v378, %v383
    %v391 = vmul.f32 %v379, %v383
    %v392 = vlaneseq
    %v393 = vshrl.u32 %v392, 7
    %v394 = vsub.s32 0, %v393
    %v395 = vrot.slane %v88, %v394
    %v396 = vadd.f32 %v384, %v395
    %v397 = vadd.f32 %v385, %v395
    %v398 = vadd.f32 %v386, %v395
    %v399 = vadd.f32 %v387, %v395
    %v400 = vadd.f32 %v388, %v395
    %v401 = vadd.f32 %v389, %v395
    %v402 = vadd.f32 %v390, %v395
    %v403 = vadd.f32 %v391, %v395
    %v404 = vmax.f32 %v396, 0.0
    %v405 = vmax.f32 %v397, 0.0
    %v406 = vmax.f32 %v398, 0.0
    %v407 = vmax.f32 %v399, 0.0
    %v408 = vmax.f32 %v400, 0.0
    %v409 = vmax.f32 %v401, 0.0
    %v410 = vmax.f32 %v402, 0.0
    %v411 = vmax.f32 %v403, 0.0
    %v412 = vlaneseq
    %v413 = vshrl.u32 %v412, 7
    %v414 = vsub.s32 0, %v413
    %v415 = vrot.slane %v89, %v414
    %416 = vmatprep.subr.mxu0 0.0
    %417 = vmatpush1.msra.mxu0 %v70
    %418 = vmatprep.subr.mxu0 0.0
    %419 = vmatpush1.msra.mxu0 %v71
    %420 = vmatprep.subr.mxu0 0.0
    %421 = vmatpush1.msra.mxu0 %v72
    %422 = vmatprep.subr.mxu0 0.0
    %423 = vmatpush1.msra.mxu0 %v73
    %424 = vmatprep.subr.mxu0 0.0
    %425 = vmatpush1.msra.mxu0 %v74
    %426 = vmatprep.subr.mxu0 0.0
    %427 = vmatpush1.msra.mxu0 %v75
    %428 = vmatprep.subr.mxu0 0.0
    %429 = vmatpush1.msra.mxu0 %v76
    %430 = vmatprep.subr.mxu0 0.0
    %431 = vmatpush1.msra.mxu0 %v77
    %432 = vmatprep.subr.mxu0 0.0
    %433 = vmatpush1.msra.mxu0 %v78
    %434 = vmatprep.subr.mxu0 0.0
    %435 = vmatpush1.msra.mxu0 %v79
    %436 = vmatprep.subr.mxu0 0.0
    %437 = vmatpush1.msra.mxu0 %v80
    %438 = vmatprep.subr.mxu0 0.0
    %439 = vmatpush1.msra.mxu0 %v81
    %440 = vmatprep.subr.mxu0 0.0
    %441 = vmatpush1.msra.mxu0 %v82
    %442 = vmatprep.subr.mxu0 0.0
    %443 = vmatpush1.msra.mxu0 %v83
    %444 = vmatprep.subr.mxu0 0.0
    %445 = vmatpush1.msra.mxu0 %v84
    %446 = vmatprep.subr.mxu0 0.0
    %447 = vmatpush1.msra.mxu0 %v85
    %448 = vmatprep.subr.mxu0 0.0
    %449 = vmatpush1.msra.mxu0 0.0
    %450 = vmatprep.subr.mxu0 0.0
    %451 = vmatpush1.msra.mxu0 0.0
    %452 = vmatprep.subr.mxu0 0.0
    %453 = vmatpush1.msra.mxu0 0.0
    %454 = vmatprep.subr.mxu0 0.0
    %455 = vmatpush1.msra.mxu0 0.0
    %456 = vmatprep.subr.mxu0 0.0
    %457 = vmatpush1.msra.mxu0 0.0
    %458 = vmatprep.subr.mxu0 0.0
    %459 = vmatpush1.msra.mxu0 0.0
    %460 = vmatprep.subr.mxu0 0.0
    %461 = vmatpush1.msra.mxu0 0.0
    %462 = vmatprep.subr.mxu0 0.0
    %463 = vmatpush1.msra.mxu0 0.0
    %464 = vmatprep.subr.mxu0 0.0
    %465 = vmatpush1.msra.mxu0 0.0
    %466 = vmatprep.subr.mxu0 0.0
    %467 = vmatpush1.msra.mxu0 0.0
    %468 = vmatprep.subr.mxu0 0.0
    %469 = vmatpush1.msra.mxu0 0.0
    %470 = vmatprep.subr.mxu0 0.0
    %471 = vmatpush1.msra.mxu0 0.0
    %472 = vmatprep.subr.mxu0 0.0
    %473 = vmatpush1.msra.mxu0 0.0
    %474 = vmatprep.subr.mxu0 0.0
    %475 = vmatpush1.msra.mxu0 0.0
    %476 = vmatprep.subr.mxu0 0.0
    %477 = vmatpush1.msra.mxu0 0.0
    %478 = vmatprep.subr.mxu0 0.0
    %479 = vmatpush1.msra.mxu0 0.0
    %480 = vmatprep.mubr.f32.mxu0 0.0
    %481 = vmatmul.mubr.f32.gmra.mrb[0].mxu0 %v404
    %v482 = vpop.f32.mrb[0].mxu0
    %v483 = vadd.f32 %v415, %v482
    %v484 = vpop.f32.mrb[0].mxu0
    %485 = vmatprep.mubr.f32.mxu0 0.0
    %486 = vmatmul.mubr.f32.gmra.mrb[0].mxu0 %v405
    %v487 = vpop.f32.mrb[0].mxu0
    %v488 = vadd.f32 %v415, %v487
    %v489 = vpop.f32.mrb[0].mxu0
    %490 = vmatprep.mubr.f32.mxu0 0.0
    %491 = vmatmul.mubr.f32.gmra.mrb[0].mxu0 %v406
    %v492 = vpop.f32.mrb[0].mxu0
    %v493 = vadd.f32 %v415, %v492
    %v494 = vpop.f32.mrb[0].mxu0
    %495 = vmatprep.mubr.f32.mxu0 0.0
    %496 = vmatmul.mubr.f32.gmra.mrb[0].mxu0 %v407
    %v497 = vpop.f32.mrb[0].mxu0
    %v498 = vadd.f32 %v415, %v497
    %v499 = vpop.f32.mrb[0].mxu0
    %500 = vmatprep.mubr.f32.mxu0 0.0
    %501 = vmatmul.mubr.f32.gmra.mrb[0].mxu0 %v408
    %v502 = vpop.f32.mrb[0].mxu0
    %v503 = vadd.f32 %v415, %v502
    %v504 = vpop.f32.mrb[0].mxu0
    %505 = vmatprep.mubr.f32.mxu0 0.0
    %506 = vmatmul.mubr.f32.gmra.mrb[0].mxu0 %v409
    %v507 = vpop.f32.mrb[0].mxu0
    %v508 = vadd.f32 %v415, %v507
    %v509 = vpop.f32.mrb[0].mxu0
    %510 = vmatprep.mubr.f32.mxu0 0.0
    %511 = vmatmul.mubr.f32.gmra.mrb[0].mxu0 %v410
    %v512 = vpop.f32.mrb[0].mxu0
    %v513 = vadd.f32 %v415, %v512
    %v514 = vpop.f32.mrb[0].mxu0
    %515 = vmatprep.mubr.f32.mxu0 0.0
    %516 = vmatmul.mubr.f32.gmra.mrb[0].mxu0 %v411
    %v517 = vpop.f32.mrb[0].mxu0
    %v518 = vadd.f32 %v415, %v517
    %v519 = vpop.f32.mrb[0].mxu0
    %520 = vdwg.mxu0
    %v521 = vadd.f32 %v483, %v488
    %v522 = vadd.f32 %v521, %v493
    %v523 = vadd.f32 %v522, %v498
    %v524 = vadd.f32 %v523, %v503
    %v525 = vadd.f32 %v524, %v508
    %v526 = vadd.f32 %v525, %v513
    %v527 = vadd.f32 %v526, %v518
    %v528 = vrot.slane %v527, 4
    %v529 = vadd.f32 %v527, %v528
    %v530 = vrot.slane %v529, 2
    %v531 = vadd.f32 %v529, %v530
    %v532 = vrot.slane %v531, 1
    %v533 = vadd.f32 %v531, %v532
    %v534 = vmul.f32 %v483, %v483
    %v535 = vmul.f32 %v488, %v488
    %v536 = vmul.f32 %v493, %v493
    %v537 = vmul.f32 %v498, %v498
    %v538 = vmul.f32 %v503, %v503
    %v539 = vmul.f32 %v508, %v508
    %v540 = vmul.f32 %v513, %v513
    %v541 = vmul.f32 %v518, %v518
    %v542 = vadd.f32 %v534, %v535
    %v543 = vadd.f32 %v542, %v536
    %v544 = vadd.f32 %v543, %v537
    %v545 = vadd.f32 %v544, %v538
    %v546 = vadd.f32 %v545, %v539
    %v547 = vadd.f32 %v546, %v540
    %v548 = vadd.f32 %v547, %v541
    %v549 = vrot.slane %v548, 4
    %v550 = vadd.f32 %v548, %v549
    %v551 = vrot.slane %v550, 2
    %v552 = vadd.f32 %v550, %v551
    %v553 = vrot.slane %v552, 1
    %v554 = vadd.f32 %v552, %v553
    %v555 = vmul.f32 %v533, 0.015625
    %v556 = vmul.f32 %v554, 0.015625
    %v557 = vmul.f32 %v555, %v555
    %v558 = vsub.f32 %v556, %v557
    %v559 = vadd.f32 %v558, 1e-05
    %v560 = vrsqrt.pop %v559
    %v561 = vmul.f32 %v90, %v560
    %v562 = vsub.f32 %v483, %v555
    %v563 = vsub.f32 %v488, %v555
    %v564 = vsub.f32 %v493, %v555
    %v565 = vsub.f32 %v498, %v555
    %v566 = vsub.f32 %v503, %v555
    %v567 = vsub.f32 %v508, %v555
    %v568 = vsub.f32 %v513, %v555
    %v569 = vsub.f32 %v518, %v555
    %v570 = vlaneseq
    %v571 = vshrl.u32 %v570, 7
    %v572 = vsub.s32 0, %v571
    %v573 = vrot.slane %v561, %v572
    %v574 = vmul.f32 %v562, %v573
    %v575 = vmul.f32 %v563, %v573
    %v576 = vmul.f32 %v564, %v573
    %v577 = vmul.f32 %v565, %v573
    %v578 = vmul.f32 %v566, %v573
    %v579 = vmul.f32 %v567, %v573
    %v580 = vmul.f32 %v568, %v573
    %v581 = vmul.f32 %v569, %v573
    %v582 = vlaneseq
    %v583 = vshrl.u32 %v582, 7
    %v584 = vsub.s32 0, %v583
    %v585 = vrot.slane %v91, %v584
    %v586 = vadd.f32 %v574, %v585
    %v587 = vadd.f32 %v575, %v585
    %v588 = vadd.f32 %v576, %v585
    %v589 = vadd.f32 %v577, %v585
    %v590 = vadd.f32 %v578, %v585
    %v591 = vadd.f32 %v579, %v585
    %v592 = vadd.f32 %v580, %v585
    %v593 = vadd.f32 %v581, %v585
    %v594 = vmax.f32 %v586, 0.0
    %v595 = vmax.f32 %v587, 0.0
    %v596 = vmax.f32 %v588, 0.0
    %v597 = vmax.f32 %v589, 0.0
    %v598 = vmax.f32 %v590, 0.0
    %v599 = vmax.f32 %v591, 0.0
    %v600 = vmax.f32 %v592, 0.0
    %v601 = vmax.f32 %v593, 0.0
    %s602 = scalar_lea.vmem [#allocation2], 256
    %v603 = vld [vmem:[%s602] sm:$0xff]
    %v604 = vld [vmem:[%s602 + $0x8] sm:$0xff]
    %v605 = vld [vmem:[%s602 + $0x10] sm:$0xff]
    %v606 = vld [vmem:[%s602 + $0x18] sm:$0xff]
    %v607 = vld [vmem:[%s602 + $0x20] sm:$0xff]
    %v608 = vld [vmem:[%s602 + $0x28] sm:$0xff]
    %v609 = vld [vmem:[%s602 + $0x30] sm:$0xff]
    %v610 = vld [vmem:[%s602 + $0x38] sm:$0xff]
    %v611 = vld [vmem:[%s602 + $0x40] sm:$0xff]
    %v612 = vld [vmem:[%s602 + $0x48] sm:$0xff]
    %v613 = vld [vmem:[%s602 + $0x50] sm:$0xff]
    %v614 = vld [vmem:[%s602 + $0x58] sm:$0xff]
    %v615 = vld [vmem:[%s602 + $0x60] sm:$0xff]
    %v616 = vld [vmem:[%s602 + $0x68] sm:$0xff]
    %v617 = vld [vmem:[%s602 + $0x70] sm:$0xff]
    %v618 = vld [vmem:[%s602 + $0x78] sm:$0xff]
    %s619 = scalar_lea.vmem [#allocation2], 384
    %v620 = vld [vmem:[%s619] sm:$0xff]
    %v621 = vld [vmem:[%s619 + $0x8] sm:$0xff]
    %v622 = vld [vmem:[%s619 + $0x10] sm:$0xff]
    %v623 = vld [vmem:[%s619 + $0x18] sm:$0xff]
    %v624 = vld [vmem:[%s619 + $0x20] sm:$0xff]
    %v625 = vld [vmem:[%s619 + $0x28] sm:$0xff]
    %v626 = vld [vmem:[%s619 + $0x30] sm:$0xff]
    %v627 = vld [vmem:[%s619 + $0x38] sm:$0xff]
    %v628 = vld [vmem:[%s619 + $0x40] sm:$0xff]
    %v629 = vld [vmem:[%s619 + $0x48] sm:$0xff]
    %v630 = vld [vmem:[%s619 + $0x50] sm:$0xff]
    %v631 = vld [vmem:[%s619 + $0x58] sm:$0xff]
    %v632 = vld [vmem:[%s619 + $0x60] sm:$0xff]
    %v633 = vld [vmem:[%s619 + $0x68] sm:$0xff]
    %v634 = vld [vmem:[%s619 + $0x70] sm:$0xff]
    %v635 = vld [vmem:[%s619 + $0x78] sm:$0xff]
    %s636 = scalar_lea.vmem %s3, 8
    %v637 = vld [vmem:[%s636] sm:$0x1]
    %v638 = vld [vmem:[%s636 + $0x1] sm:$0x1]
    %v639 = vld [vmem:[%s636 + $0x2] sm:$0x1]
    %v640 = vld [vmem:[%s636 + $0x3] sm:$0x1]
    %v641 = vld [vmem:[%s636 + $0x4] sm:$0x1]
    %v642 = vld [vmem:[%s636 + $0x5] sm:$0x1]
    %643 = vmatprep.subr.mxu0 0.0
    %644 = vmatpush1.msra.mxu0 %v594
    %645 = vmatprep.subr.mxu0 0.0
    %646 = vmatpush1.msra.mxu0 %v595
    %647 = vmatprep.subr.mxu0 0.0
    %648 = vmatpush1.msra.mxu0 %v596
    %649 = vmatprep.subr.mxu0 0.0
    %650 = vmatpush1.msra.mxu0 %v597
    %651 = vmatprep.subr.mxu0 0.0
    %652 = vmatpush1.msra.mxu0 %v598
    %653 = vmatprep.subr.mxu0 0.0
    %654 = vmatpush1.msra.mxu0 %v599
    %655 = vmatprep.subr.mxu0 0.0
    %656 = vmatpush1.msra.mxu0 %v600
    %657 = vmatprep.subr.mxu0 0.0
    %658 = vmatpush1.msra.mxu0 %v601
    %659 = vmatprep.subr.mxu0 0.0
    %660 = vmatpush1.msra.mxu0 0.0
    %661 = vmatprep.subr.mxu0 0.0
    %662 = vmatpush1.msra.mxu0 0.0
    %663 = vmatprep.subr.mxu0 0.0
    %664 = vmatpush1.msra.mxu0 0.0
    %665 = vmatprep.subr.mxu0 0.0
    %666 = vmatpush1.msra.mxu0 0.0
    %667 = vmatprep.subr.mxu0 0.0
    %668 = vmatpush1.msra.mxu0 0.0
    %669 = vmatprep.subr.mxu0 0.0
    %670 = vmatpush1.msra.mxu0 0.0
    %671 = vmatprep.subr.mxu0 0.0
    %672 = vmatpush1.msra.mxu0 0.0
    %673 = vmatprep.subr.mxu0 0.0
    %674 = vmatpush1.msra.mxu0 0.0
    %675 = vmatprep.subr.mxu0 0.0
    %676 = vmatpush1.msra.mxu0 0.0
    %677 = vmatprep.subr.mxu0 0.0
    %678 = vmatpush1.msra.mxu0 0.0
    %679 = vmatprep.subr.mxu0 0.0
    %680 = vmatpush1.msra.mxu0 0.0
    %681 = vmatprep.subr.mxu0 0.0
    %682 = vmatpush1.msra.mxu0 0.0
    %683 = vmatprep.subr.mxu0 0.0
    %684 = vmatpush1.msra.mxu0 0.0
    %685 = vmatprep.subr.mxu0 0.0
    %686 = vmatpush1.msra.mxu0 0.0
    %687 = vmatprep.subr.mxu0 0.0
    %688 = vmatpush1.msra.mxu0 0.0
    %689 = vmatprep.subr.mxu0 0.0
    %690 = vmatpush1.msra.mxu0 0.0
    %691 = vmatprep.subr.mxu0 0.0
    %692 = vmatpush1.msra.mxu0 0.0
    %693 = vmatprep.subr.mxu0 0.0
    %694 = vmatpush1.msra.mxu0 0.0
    %695 = vmatprep.subr.mxu0 0.0
    %696 = vmatpush1.msra.mxu0 0.0
    %697 = vmatprep.subr.mxu0 0.0
    %698 = vmatpush1.msra.mxu0 0.0
    %699 = vmatprep.subr.mxu0 0.0
    %700 = vmatpush1.msra.mxu0 0.0
    %701 = vmatprep.subr.mxu0 0.0
    %702 = vmatpush1.msra.mxu0 0.0
    %703 = vmatprep.subr.mxu0 0.0
    %704 = vmatpush1.msra.mxu0 0.0
    %705 = vmatprep.subr.mxu0 0.0
    %706 = vmatpush1.msra.mxu0 0.0
    %707 = vmatprep.mubr.f32.mxu0 0.0
    %708 = vmatmul.mubr.f32.gmra.mrb[0].mxu0 %v94
    %v709 = vpop.f32.mrb[0].mxu0
    %v710 = vadd.f32 0.0, %v709
    %v711 = vpop.f32.mrb[0].mxu0
    %712 = vmatprep.mubr.f32.mxu0 0.0
    %713 = vmatmul.mubr.f32.gmra.mrb[0].mxu0 %v97
    %v714 = vpop.f32.mrb[0].mxu0
    %v715 = vadd.f32 0.0, %v714
    %v716 = vpop.f32.mrb[0].mxu0
    %717 = vmatprep.mubr.f32.mxu0 0.0
    %718 = vmatmul.mubr.f32.gmra.mrb[0].mxu0 %v100
    %v719 = vpop.f32.mrb[0].mxu0
    %v720 = vadd.f32 0.0, %v719
    %v721 = vpop.f32.mrb[0].mxu0
    %722 = vmatprep.mubr.f32.mxu0 0.0
    %723 = vmatmul.mubr.f32.gmra.mrb[0].mxu0 %v103
    %v724 = vpop.f32.mrb[0].mxu0
    %v725 = vadd.f32 0.0, %v724
    %v726 = vpop.f32.mrb[0].mxu0
    %727 = vmatprep.mubr.f32.mxu0 0.0
    %728 = vmatmul.mubr.f32.gmra.mrb[0].mxu0 %v106
    %v729 = vpop.f32.mrb[0].mxu0
    %v730 = vadd.f32 0.0, %v729
    %v731 = vpop.f32.mrb[0].mxu0
    %732 = vmatprep.mubr.f32.mxu0 0.0
    %733 = vmatmul.mubr.f32.gmra.mrb[0].mxu0 %v109
    %v734 = vpop.f32.mrb[0].mxu0
    %v735 = vadd.f32 0.0, %v734
    %v736 = vpop.f32.mrb[0].mxu0
    %737 = vmatprep.mubr.f32.mxu0 0.0
    %738 = vmatmul.mubr.f32.gmra.mrb[0].mxu0 %v112
    %v739 = vpop.f32.mrb[0].mxu0
    %v740 = vadd.f32 0.0, %v739
    %v741 = vpop.f32.mrb[0].mxu0
    %742 = vmatprep.mubr.f32.mxu0 0.0
    %743 = vmatmul.mubr.f32.gmra.mrb[0].mxu0 %v115
    %v744 = vpop.f32.mrb[0].mxu0
    %v745 = vadd.f32 0.0, %v744
    %v746 = vpop.f32.mrb[0].mxu0
    %747 = vdwg.mxu0
    %v748 = vlaneseq
    %v749 = vshrl.u32 %v748, 7
    %v750 = vsub.s32 0, %v749
    %v751 = vrot.slane %v637, %v750
    %752 = vmatprep.subr.mxu0 0.0
    %753 = vmatpush1.msra.mxu0 %v603
    %754 = vmatprep.subr.mxu0 0.0
    %755 = vmatpush1.msra.mxu0 %v604
    %756 = vmatprep.subr.mxu0 0.0
    %757 = vmatpush1.msra.mxu0 %v605
    %758 = vmatprep.subr.mxu0 0.0
    %759 = vmatpush1.msra.mxu0 %v606
    %760 = vmatprep.subr.mxu0 0.0
    %761 = vmatpush1.msra.mxu0 %v607
    %762 = vmatprep.subr.mxu0 0.0
    %763 = vmatpush1.msra.mxu0 %v608
    %764 = vmatprep.subr.mxu0 0.0
    %765 = vmatpush1.msra.mxu0 %v609
    %766 = vmatprep.subr.mxu0 0.0
    %767 = vmatpush1.msra.mxu0 %v610
    %768 = vmatprep.subr.mxu0 0.0
    %769 = vmatpush1.msra.mxu0 %v611
    %770 = vmatprep.subr.mxu0 0.0
    %771 = vmatpush1.msra.mxu0 %v612
    %772 = vmatprep.subr.mxu0 0.0
    %773 = vmatpush1.msra.mxu0 %v613
    %774 = vmatprep.subr.mxu0 0.0
    %775 = vmatpush1.msra.mxu0 %v614
    %776 = vmatprep.subr.mxu0 0.0
    %777 = vmatpush1.msra.mxu0 %v615
    %778 = vmatprep.subr.mxu0 0.0
    %779 = vmatpush1.msra.mxu0 %v616
    %780 = vmatprep.subr.mxu0 0.0
    %781 = vmatpush1.msra.mxu0 %v617
    %782 = vmatprep.subr.mxu0 0.0
    %783 = vmatpush1.msra.mxu0 %v618
    %784 = vmatprep.subr.mxu0 0.0
    %785 = vmatpush1.msra.mxu0 0.0
    %786 = vmatprep.subr.mxu0 0.0
    %787 = vmatpush1.msra.mxu0 0.0
    %788 = vmatprep.subr.mxu0 0.0
    %789 = vmatpush1.msra.mxu0 0.0
    %790 = vmatprep.subr.mxu0 0.0
    %791 = vmatpush1.msra.mxu0 0.0
    %792 = vmatprep.subr.mxu0 0.0
    %793 = vmatpush1.msra.mxu0 0.0
    %794 = vmatprep.subr.mxu0 0.0
    %795 = vmatpush1.msra.mxu0 0.0
    %796 = vmatprep.subr.mxu0 0.0
    %797 = vmatpush1.msra.mxu0 0.0
    %798 = vmatprep.subr.mxu0 0.0
    %799 = vmatpush1.msra.mxu0 0.0
    %800 = vmatprep.subr.mxu0 0.0
    %801 = vmatpush1.msra.mxu0 0.0
    %802 = vmatprep.subr.mxu0 0.0
    %803 = vmatpush1.msra.mxu0 0.0
    %804 = vmatprep.subr.mxu0 0.0
    %805 = vmatpush1.msra.mxu0 0.0
    %806 = vmatprep.subr.mxu0 0.0
    %807 = vmatpush1.msra.mxu0 0.0
    %808 = vmatprep.subr.mxu0 0.0
    %809 = vmatpush1.msra.mxu0 0.0
    %810 = vmatprep.subr.mxu0 0.0
    %811 = vmatpush1.msra.mxu0 0.0
    %812 = vmatprep.subr.mxu0 0.0
    %813 = vmatpush1.msra.mxu0 0.0
    %814 = vmatprep.subr.mxu0 0.0
    %815 = vmatpush1.msra.mxu0 0.0
    %816 = vmatprep.mubr.f32.mxu0 0.0
    %817 = vmatmul.mubr.f32.gmra.mrb[0].mxu0 %v710
    %v818 = vpop.f32.mrb[0].mxu0
    %v819 = vadd.f32 %v751, %v818
    %v820 = vpop.f32.mrb[0].mxu0
    %821 = vmatprep.mubr.f32.mxu0 0.0
    %822 = vmatmul.mubr.f32.gmra.mrb[0].mxu0 %v715
    %v823 = vpop.f32.mrb[0].mxu0
    %v824 = vadd.f32 %v751, %v823
    %v825 = vpop.f32.mrb[0].mxu0
    %826 = vmatprep.mubr.f32.mxu0 0.0
    %827 = vmatmul.mubr.f32.gmra.mrb[0].mxu0 %v720
    %v828 = vpop.f32.mrb[0].mxu0
    %v829 = vadd.f32 %v751, %v828
    %v830 = vpop.f32.mrb[0].mxu0
    %831 = vmatprep.mubr.f32.mxu0 0.0
    %832 = vmatmul.mubr.f32.gmra.mrb[0].mxu0 %v725
    %v833 = vpop.f32.mrb[0].mxu0
    %v834 = vadd.f32 %v751, %v833
    %v835 = vpop.f32.mrb[0].mxu0
    %836 = vmatprep.mubr.f32.mxu0 0.0
    %837 = vmatmul.mubr.f32.gmra.mrb[0].mxu0 %v730
    %v838 = vpop.f32.mrb[0].mxu0
    %v839 = vadd.f32 %v751, %v838
    %v840 = vpop.f32.mrb[0].mxu0
    %841 = vmatprep.mubr.f32.mxu0 0.0
    %842 = vmatmul.mubr.f32.gmra.mrb[0].mxu0 %v735
    %v843 = vpop.f32.mrb[0].mxu0
    %v844 = vadd.f32 %v751, %v843
    %v845 = vpop.f32.mrb[0].mxu0
    %846 = vmatprep.mubr.f32.mxu0 0.0
    %847 = vmatmul.mubr.f32.gmra.mrb[0].mxu0 %v740
    %v848 = vpop.f32.mrb[0].mxu0
    %v849 = vadd.f32 %v751, %v848
    %v850 = vpop.f32.mrb[0].mxu0
    %851 = vmatprep.mubr.f32.mxu0 0.0
    %852 = vmatmul.mubr.f32.gmra.mrb[0].mxu0 %v745
    %v853 = vpop.f32.mrb[0].mxu0
    %v854 = vadd.f32 %v751, %v853
    %v855 = vpop.f32.mrb[0].mxu0
    %856 = vdwg.mxu0
    %v857 = vadd.f32 %v819, %v824
    %v858 = vadd.f32 %v857, %v829
    %v859 = vadd.f32 %v858, %v834
    %v860 = vadd.f32 %v859, %v839
    %v861 = vadd.f32 %v860, %v844
    %v862 = vadd.f32 %v861, %v849
    %v863 = vadd.f32 %v862, %v854
    %v864 = vrot.slane %v863, 4
    %v865 = vadd.f32 %v863, %v864
    %v866 = vrot.slane %v865, 2
    %v867 = vadd.f32 %v865, %v866
    %v868 = vrot.slane %v867, 1
    %v869 = vadd.f32 %v867, %v868
    %v870 = vmul.f32 %v819, %v819
    %v871 = vmul.f32 %v824, %v824
    %v872 = vmul.f32 %v829, %v829
    %v873 = vmul.f32 %v834, %v834
    %v874 = vmul.f32 %v839, %v839
    %v875 = vmul.f32 %v844, %v844
    %v876 = vmul.f32 %v849, %v849
    %v877 = vmul.f32 %v854, %v854
    %v878 = vadd.f32 %v870, %v871
    %v879 = vadd.f32 %v878, %v872
    %v880 = vadd.f32 %v879, %v873
    %v881 = vadd.f32 %v880, %v874
    %v882 = vadd.f32 %v881, %v875
    %v883 = vadd.f32 %v882, %v876
    %v884 = vadd.f32 %v883, %v877
    %v885 = vrot.slane %v884, 4
    %v886 = vadd.f32 %v884, %v885
    %v887 = vrot.slane %v886, 2
    %v888 = vadd.f32 %v886, %v887
    %v889 = vrot.slane %v888, 1
    %v890 = vadd.f32 %v888, %v889
    %v891 = vmul.f32 %v869, 0.015625
    %v892 = vmul.f32 %v890, 0.015625
    %v893 = vmul.f32 %v891, %v891
    %v894 = vsub.f32 %v892, %v893
    %v895 = vadd.f32 %v894, 1e-05
    %v896 = vrsqrt.pop %v895
    %v897 = vmul.f32 %v638, %v896
    %v898 = vsub.f32 %v819, %v891
    %v899 = vsub.f32 %v824, %v891
    %v900 = vsub.f32 %v829, %v891
    %v901 = vsub.f32 %v834, %v891
    %v902 = vsub.f32 %v839, %v891
    %v903 = vsub.f32 %v844, %v891
    %v904 = vsub.f32 %v849, %v891
    %v905 = vsub.f32 %v854, %v891
    %v906 = vlaneseq
    %v907 = vshrl.u32 %v906, 7
    %v908 = vsub.s32 0, %v907
    %v909 = vrot.slane %v897, %v908
    %v910 = vmul.f32 %v898, %v909
    %v911 = vmul.f32 %v899, %v909
    %v912 = vmul.f32 %v900, %v909
    %v913 = vmul.f32 %v901, %v909
    %v914 = vmul.f32 %v902, %v909
    %v915 = vmul.f32 %v903, %v909
    %v916 = vmul.f32 %v904, %v909
    %v917 = vmul.f32 %v905, %v909
    %v918 = vlaneseq
    %v919 = vshrl.u32 %v918, 7
    %v920 = vsub.s32 0, %v919
    %v921 = vrot.slane %v639, %v920
    %v922 = vadd.f32 %v910, %v921
    %v923 = vadd.f32 %v911, %v921
    %v924 = vadd.f32 %v912, %v921
    %v925 = vadd.f32 %v913, %v921
    %v926 = vadd.f32 %v914, %v921
    %v927 = vadd.f32 %v915, %v921
    %v928 = vadd.f32 %v916, %v921
    %v929 = vadd.f32 %v917, %v921
    %v930 = vmax.f32 %v922, 0.0
    %v931 = vmax.f32 %v923, 0.0
    %v932 = vmax.f32 %v924, 0.0
    %v933 = vmax.f32 %v925, 0.0
    %v934 = vmax.f32 %v926, 0.0
    %v935 = vmax.f32 %v927, 0.0
    %v936 = vmax.f32 %v928, 0.0
    %v937 = vmax.f32 %v929, 0.0
    %v938 = vlaneseq
    %v939 = vshrl.u32 %v938, 7
    %v940 = vsub.s32 0, %v939
    %v941 = vrot.slane %v640, %v940
    %942 = vmatprep.subr.mxu0 0.0
    %943 = vmatpush1.msra.mxu0 %v620
    %944 = vmatprep.subr.mxu0 0.0
    %945 = vmatpush1.msra.mxu0 %v621
    %946 = vmatprep.subr.mxu0 0.0
    %947 = vmatpush1.msra.mxu0 %v622
    %948 = vmatprep.subr.mxu0 0.0
    %949 = vmatpush1.msra.mxu0 %v623
    %950 = vmatprep.subr.mxu0 0.0
    %951 = vmatpush1.msra.mxu0 %v624
    %952 = vmatprep.subr.mxu0 0.0
    %953 = vmatpush1.msra.mxu0 %v625
    %954 = vmatprep.subr.mxu0 0.0
    %955 = vmatpush1.msra.mxu0 %v626
    %956 = vmatprep.subr.mxu0 0.0
    %957 = vmatpush1.msra.mxu0 %v627
    %958 = vmatprep.subr.mxu0 0.0
    %959 = vmatpush1.msra.mxu0 %v628
    %960 = vmatprep.subr.mxu0 0.0
    %961 = vmatpush1.msra.mxu0 %v629
    %962 = vmatprep.subr.mxu0 0.0
    %963 = vmatpush1.msra.mxu0 %v630
    %964 = vmatprep.subr.mxu0 0.0
    %965 = vmatpush1.msra.mxu0 %v631
    %966 = vmatprep.subr.mxu0 0.0
    %967 = vmatpush1.msra.mxu0 %v632
    %968 = vmatprep.subr.mxu0 0.0
    %969 = vmatpush1.msra.mxu0 %v633
    %970 = vmatprep.subr.mxu0 0.0
    %971 = vmatpush1.msra.mxu0 %v634
    %972 = vmatprep.subr.mxu0 0.0
    %973 = vmatpush1.msra.mxu0 %v635
    %974 = vmatprep.subr.mxu0 0.0
    %975 = vmatpush1.msra.mxu0 0.0
    %976 = vmatprep.subr.mxu0 0.0
    %977 = vmatpush1.msra.mxu0 0.0
    %978 = vmatprep.subr.mxu0 0.0
    %979 = vmatpush1.msra.mxu0 0.0
    %980 = vmatprep.subr.mxu0 0.0
    %981 = vmatpush1.msra.mxu0 0.0
    %982 = vmatprep.subr.mxu0 0.0
    %983 = vmatpush1.msra.mxu0 0.0
    %984 = vmatprep.subr.mxu0 0.0
    %985 = vmatpush1.msra.mxu0 0.0
    %986 = vmatprep.subr.mxu0 0.0
    %987 = vmatpush1.msra.mxu0 0.0
    %988 = vmatprep.subr.mxu0 0.0
    %989 = vmatpush1.msra.mxu0 0.0
    %990 = vmatprep.subr.mxu0 0.0
    %991 = vmatpush1.msra.mxu0 0.0
    %992 = vmatprep.subr.mxu0 0.0
    %993 = vmatpush1.msra.mxu0 0.0
    %994 = vmatprep.subr.mxu0 0.0
    %995 = vmatpush1.msra.mxu0 0.0
    %996 = vmatprep.subr.mxu0 0.0
    %997 = vmatpush1.msra.mxu0 0.0
    %998 = vmatprep.subr.mxu0 0.0
    %999 = vmatpush1.msra.mxu0 0.0
    %1000 = vmatprep.subr.mxu0 0.0
    %1001 = vmatpush1.msra.mxu0 0.0
    %1002 = vmatprep.subr.mxu0 0.0
    %1003 = vmatpush1.msra.mxu0 0.0
    %1004 = vmatprep.subr.mxu0 0.0
    %1005 = vmatpush1.msra.mxu0 0.0
    %1006 = vmatprep.mubr.f32.mxu0 0.0
    %1007 = vmatmul.mubr.f32.gmra.mrb[0].mxu0 %v930
    %v1008 = vpop.f32.mrb[0].mxu0
    %v1009 = vadd.f32 %v941, %v1008
    %v1010 = vpop.f32.mrb[0].mxu0
    %1011 = vmatprep.mubr.f32.mxu0 0.0
    %1012 = vmatmul.mubr.f32.gmra.mrb[0].mxu0 %v931
    %v1013 = vpop.f32.mrb[0].mxu0
    %v1014 = vadd.f32 %v941, %v1013
    %v1015 = vpop.f32.mrb[0].mxu0
    %1016 = vmatprep.mubr.f32.mxu0 0.0
    %1017 = vmatmul.mubr.f32.gmra.mrb[0].mxu0 %v932
    %v1018 = vpop.f32.mrb[0].mxu0
    %v1019 = vadd.f32 %v941, %v1018
    %v1020 = vpop.f32.mrb[0].mxu0
    %1021 = vmatprep.mubr.f32.mxu0 0.0
    %1022 = vmatmul.mubr.f32.gmra.mrb[0].mxu0 %v933
    %v1023 = vpop.f32.mrb[0].mxu0
    %v1024 = vadd.f32 %v941, %v1023
    %v1025 = vpop.f32.mrb[0].mxu0
    %1026 = vmatprep.mubr.f32.mxu0 0.0
    %1027 = vmatmul.mubr.f32.gmra.mrb[0].mxu0 %v934
    %v1028 = vpop.f32.mrb[0].mxu0
    %v1029 = vadd.f32 %v941, %v1028
    %v1030 = vpop.f32.mrb[0].mxu0
    %1031 = vmatprep.mubr.f32.mxu0 0.0
    %1032 = vmatmul.mubr.f32.gmra.mrb[0].mxu0 %v935
    %v1033 = vpop.f32.mrb[0].mxu0
    %v1034 = vadd.f32 %v941, %v1033
    %v1035 = vpop.f32.mrb[0].mxu0
    %1036 = vmatprep.mubr.f32.mxu0 0.0
    %1037 = vmatmul.mubr.f32.gmra.mrb[0].mxu0 %v936
    %v1038 = vpop.f32.mrb[0].mxu0
    %v1039 = vadd.f32 %v941, %v1038
    %v1040 = vpop.f32.mrb[0].mxu0
    %1041 = vmatprep.mubr.f32.mxu0 0.0
    %1042 = vmatmul.mubr.f32.gmra.mrb[0].mxu0 %v937
    %v1043 = vpop.f32.mrb[0].mxu0
    %v1044 = vadd.f32 %v941, %v1043
    %v1045 = vpop.f32.mrb[0].mxu0
    %1046 = vdwg.mxu0
    %v1047 = vadd.f32 %v1009, %v1014
    %v1048 = vadd.f32 %v1047, %v1019
    %v1049 = vadd.f32 %v1048, %v1024
    %v1050 = vadd.f32 %v1049, %v1029
    %v1051 = vadd.f32 %v1050, %v1034
    %v1052 = vadd.f32 %v1051, %v1039
    %v1053 = vadd.f32 %v1052, %v1044
    %v1054 = vrot.slane %v1053, 4
    %v1055 = vadd.f32 %v1053, %v1054
    %v1056 = vrot.slane %v1055, 2
    %v1057 = vadd.f32 %v1055, %v1056
    %v1058 = vrot.slane %v1057, 1
    %v1059 = vadd.f32 %v1057, %v1058
    %v1060 = vmul.f32 %v1009, %v1009
    %v1061 = vmul.f32 %v1014, %v1014
    %v1062 = vmul.f32 %v1019, %v1019
    %v1063 = vmul.f32 %v1024, %v1024
    %v1064 = vmul.f32 %v1029, %v1029
    %v1065 = vmul.f32 %v1034, %v1034
    %v1066 = vmul.f32 %v1039, %v1039
    %v1067 = vmul.f32 %v1044, %v1044
    %v1068 = vadd.f32 %v1060, %v1061
    %v1069 = vadd.f32 %v1068, %v1062
    %v1070 = vadd.f32 %v1069, %v1063
    %v1071 = vadd.f32 %v1070, %v1064
    %v1072 = vadd.f32 %v1071, %v1065
    %v1073 = vadd.f32 %v1072, %v1066
    %v1074 = vadd.f32 %v1073, %v1067
    %v1075 = vrot.slane %v1074, 4
    %v1076 = vadd.f32 %v1074, %v1075
    %v1077 = vrot.slane %v1076, 2
    %v1078 = vadd.f32 %v1076, %v1077
    %v1079 = vrot.slane %v1078, 1
    %v1080 = vadd.f32 %v1078, %v1079
    %v1081 = vmul.f32 %v1059, 0.015625
    %v1082 = vmul.f32 %v1080, 0.015625
    %v1083 = vmul.f32 %v1081, %v1081
    %v1084 = vsub.f32 %v1082, %v1083
    %v1085 = vadd.f32 %v1084, 1e-05
    %v1086 = vrsqrt.pop %v1085
    %v1087 = vmul.f32 %v641, %v1086
    %v1088 = vsub.f32 %v1009, %v1081
    %v1089 = vsub.f32 %v1014, %v1081
    %v1090 = vsub.f32 %v1019, %v1081
    %v1091 = vsub.f32 %v1024, %v1081
    %v1092 = vsub.f32 %v1029, %v1081
    %v1093 = vsub.f32 %v1034, %v1081
    %v1094 = vsub.f32 %v1039, %v1081
    %v1095 = vsub.f32 %v1044, %v1081
    %v1096 = vlaneseq
    %v1097 = vshrl.u32 %v1096, 7
    %v1098 = vsub.s32 0, %v1097
    %v1099 = vrot.slane %v1087, %v1098
    %v1100 = vmul.f32 %v1088, %v1099
    %v1101 = vmul.f32 %v1089, %v1099
    %v1102 = vmul.f32 %v1090, %v1099
    %v1103 = vmul.f32 %v1091, %v1099
    %v1104 = vmul.f32 %v1092, %v1099
    %v1105 = vmul.f32 %v1093, %v1099
    %v1106 = vmul.f32 %v1094, %v1099
    %v1107 = vmul.f32 %v1095, %v1099
    %v1108 = vlaneseq
    %v1109 = vshrl.u32 %v1108, 7
    %v1110 = vsub.s32 0, %v1109
    %v1111 = vrot.slane %v642, %v1110
    %v1112 = vadd.f32 %v1100, %v1111
    %v1113 = vadd.f32 %v1101, %v1111
    %v1114 = vadd.f32 %v1102, %v1111
    %v1115 = vadd.f32 %v1103, %v1111
    %v1116 = vadd.f32 %v1104, %v1111
    %v1117 = vadd.f32 %v1105, %v1111
    %v1118 = vadd.f32 %v1106, %v1111
    %v1119 = vadd.f32 %v1107, %v1111
    %v1120 = vmax.f32 %v1112, 0.0
    %v1121 = vmax.f32 %v1113, 0.0
    %v1122 = vmax.f32 %v1114, 0.0
    %v1123 = vmax.f32 %v1115, 0.0
    %v1124 = vmax.f32 %v1116, 0.0
    %v1125 = vmax.f32 %v1117, 0.0
    %v1126 = vmax.f32 %v1118, 0.0
    %v1127 = vmax.f32 %v1119, 0.0
    %1128 = vst [vmem:[%s6] sm:$0xff] %v1120
    %1129 = vst [vmem:[%s6 + $0x8] sm:$0xff] %v1121
    %1130 = vst [vmem:[%s6 + $0x10] sm:$0xff] %v1122
    %1131 = vst [vmem:[%s6 + $0x18] sm:$0xff] %v1123
    %1132 = vst [vmem:[%s6 + $0x20] sm:$0xff] %v1124
    %1133 = vst [vmem:[%s6 + $0x28] sm:$0xff] %v1125
    %1134 = vst [vmem:[%s6 + $0x30] sm:$0xff] %v1126
    %1135 = vst [vmem:[%s6 + $0x38] sm:$0xff] %v1127
    %v1136 = vld [vmem:[%s4] sm:$0x3]
    %v1138 = vsel %vm92, %v1136, 0
    %1140 = vmatprep.subr.mxu0 0.0
    %1141 = vmatpush1.msra.mxu0 %v1120
    %1142 = vmatprep.subr.mxu0 0.0
    %1143 = vmatpush1.msra.mxu0 %v1121
    %1144 = vmatprep.subr.mxu0 0.0
    %1145 = vmatpush1.msra.mxu0 %v1122
    %1146 = vmatprep.subr.mxu0 0.0
    %1147 = vmatpush1.msra.mxu0 %v1123
    %1148 = vmatprep.subr.mxu0 0.0
    %1149 = vmatpush1.msra.mxu0 %v1124
    %1150 = vmatprep.subr.mxu0 0.0
    %1151 = vmatpush1.msra.mxu0 %v1125
    %1152 = vmatprep.subr.mxu0 0.0
    %1153 = vmatpush1.msra.mxu0 %v1126
    %1154 = vmatprep.subr.mxu0 0.0
    %1155 = vmatpush1.msra.mxu0 %v1127
    %1156 = vmatprep.subr.mxu0 0.0
    %1157 = vmatpush1.msra.mxu0 0.0
    %1158 = vmatprep.subr.mxu0 0.0
    %1159 = vmatpush1.msra.mxu0 0.0
    %1160 = vmatprep.subr.mxu0 0.0
    %1161 = vmatpush1.msra.mxu0 0.0
    %1162 = vmatprep.subr.mxu0 0.0
    %1163 = vmatpush1.msra.mxu0 0.0
    %1164 = vmatprep.subr.mxu0 0.0
    %1165 = vmatpush1.msra.mxu0 0.0
    %1166 = vmatprep.subr.mxu0 0.0
    %1167 = vmatpush1.msra.mxu0 0.0
    %1168 = vmatprep.subr.mxu0 0.0
    %1169 = vmatpush1.msra.mxu0 0.0
    %1170 = vmatprep.subr.mxu0 0.0
    %1171 = vmatpush1.msra.mxu0 0.0
    %1172 = vmatprep.subr.mxu0 0.0
    %1173 = vmatpush1.msra.mxu0 0.0
    %1174 = vmatprep.subr.mxu0 0.0
    %1175 = vmatpush1.msra.mxu0 0.0
    %1176 = vmatprep.subr.mxu0 0.0
    %1177 = vmatpush1.msra.mxu0 0.0
    %1178 = vmatprep.subr.mxu0 0.0
    %1179 = vmatpush1.msra.mxu0 0.0
    %1180 = vmatprep.subr.mxu0 0.0
    %1181 = vmatpush1.msra.mxu0 0.0
    %1182 = vmatprep.subr.mxu0 0.0
    %1183 = vmatpush1.msra.mxu0 0.0
    %1184 = vmatprep.subr.mxu0 0.0
    %1185 = vmatpush1.msra.mxu0 0.0
    %1186 = vmatprep.subr.mxu0 0.0
    %1187 = vmatpush1.msra.mxu0 0.0
    %1188 = vmatprep.subr.mxu0 0.0
    %1189 = vmatpush1.msra.mxu0 0.0
    %1190 = vmatprep.subr.mxu0 0.0
    %1191 = vmatpush1.msra.mxu0 0.0
    %1192 = vmatprep.subr.mxu0 0.0
    %1193 = vmatpush1.msra.mxu0 0.0
    %1194 = vmatprep.subr.mxu0 0.0
    %1195 = vmatpush1.msra.mxu0 0.0
    %1196 = vmatprep.subr.mxu0 0.0
    %1197 = vmatpush1.msra.mxu0 0.0
    %1198 = vmatprep.subr.mxu0 0.0
    %1199 = vmatpush1.msra.mxu0 0.0
    %1200 = vmatprep.subr.mxu0 0.0
    %1201 = vmatpush1.msra.mxu0 0.0
    %1202 = vmatprep.subr.mxu0 0.0
    %1203 = vmatpush1.msra.mxu0 0.0
    %1204 = vmatprep.mubr.f32.mxu0 0.0
    %1205 = vmatmul.mubr.f32.gmra.mrb[0].mxu0 %v1138
    %v1206 = vpop.f32.mrb[0].mxu0
    %v1207 = vadd.f32 0.0, %v1206
    %v1208 = vpop.f32.mrb[0].mxu0
    %1209 = vdwg.mxu0
    %1210 = vst [vmem:[#allocation5] sm:$0x3] %v1207
    // Predicated region
    $region26: #{graph_cnn_forward.1} parent=1 // pred_check
      _
    $region27: #{graph_cnn_forward.1} parent=1 // pred_check_branch
      %1212 = sbr.rel (0) target = $region29
    $region28: #{graph_cnn_forward.1} parent=1 // pred_region
      %s1214 = ssub.s32 32, 32
      %1215 = vsyncadd [#allocation4], %s1214
      %s1217 = sshll.u32 [#allocation5], 4
      %s1218 = int_to_ptr.vmem [resolvable:$true] %s1217
      %1220 = dma.vmem_to_hbm [thread:$0]  %s1218, 32, %s5, [#allocation4]
    $region29: #{graph_cnn_forward.1} parent=1 // pred_fallthru
      _
    // Predicated region
    $region30: #{graph_cnn_forward.1} parent=1 // pred_check
      _
    $region31: #{graph_cnn_forward.1} parent=1 // pred_check_branch
      %1222 = sbr.rel (0) target = $region33
    $region32: #{graph_cnn_forward.1} parent=1 // pred_region
      _
    $region33: #{graph_cnn_forward.1} parent=1 // pred_fallthru
      _
    // Predicated region
    $region34: #{graph_cnn_forward.1} parent=1 // pred_check
      _
    $region35: #{graph_cnn_forward.1} parent=1 // pred_check_branch
      %1224 = sbr.rel (0) target = $region37
    $region36: #{graph_cnn_forward.1} parent=1 // pred_region
      %1225 = dma.done [#allocation4], 32
    $region37: #{graph_cnn_forward.1} parent=1 // pred_fallthru
      _
    // Predicated region
    $region38: #{graph_cnn_forward.1} parent=1 // pred_check
      _
    $region39: #{graph_cnn_forward.1} parent=1 // pred_check_branch
      %1227 = sbr.rel (0) target = $region41
    $region40: #{graph_cnn_forward.1} parent=1 // pred_region
      _
    $region41: #{graph_cnn_forward.1} parent=1 // pred_fallthru
      _
    %1228 = vsyncpa [#allocation3], 1
    %1229 = vsyncpa [#allocation4], 1

</llo_original>
